<compile_context>
chip_gen: v6e
topology: v6e:2x2x1
jax: 0.10.0
libtpu: 0.0.40
codegen_flags: <defaults>
</compile_context>

<pallas_src>
import functools

import jax
import jax.numpy as jnp
from jax.experimental import pallas as pl
from jax.experimental.pallas import tpu as pltpu


def _round_up(x, m):
    return ((x + m - 1) // m) * m


def _sigmoid(x):
    # logistic via tanh: a single EUP op (no exp + reciprocal pair).
    return 0.5 * jnp.tanh(0.5 * x) + 0.5


def _layernorm(x, w, b, true_dim, eps=1e-5):
    """LayerNorm over the (lane-padded) last axis.

    Centered (two-pass) variance for numerical robustness.  When the lane width
    is padded, padded lanes of `x - mu` are masked back to zero, so mean/var
    match nn.LayerNorm over the true feature dim; padded w/b entries are zero,
    so padded output lanes stay exactly 0.
    """
    d_pad = x.shape[-1]
    inv_d = 1.0 / float(true_dim)
    mu = jnp.sum(x, axis=-1, keepdims=True) * inv_d
    xc = x - mu
    if d_pad != true_dim:
        lane = jax.lax.broadcasted_iota(jnp.int32, x.shape, x.ndim - 1)
        xc = jnp.where(lane < true_dim, xc, 0.0)
    var = jnp.sum(xc * xc, axis=-1, keepdims=True) * inv_d
    return xc * jax.lax.rsqrt(var + eps) * w + b


def r_critic_kernel(obs_ref, h0_ref, masks_ref,
                    ln0w_ref, ln0b_ref,
                    w1_ref, b1_ref, ln1w_ref, ln1b_ref,
                    w2_ref, b2_ref, ln2w_ref, ln2b_ref,
                    wih_ref, whh_ref, bih_ref, bhh_ref,
                    lngw_ref, lngb_ref,
                    wv_ref, bv_ref,
                    values_ref, hout_ref,
                    *, d_obs, d_hidden):
    mm_dtype = w1_ref.dtype            # f32 (exact) or bf16 (v6e/v7x fast path)

    # ---------------- MLPBase ----------------
    x = _layernorm(obs_ref[...], ln0w_ref[...], ln0b_ref[...], d_obs)
    x = jnp.maximum(
        jnp.dot(x.astype(mm_dtype), w1_ref[...],
                preferred_element_type=jnp.float32) + b1_ref[...], 0.0)
    x = _layernorm(x, ln1w_ref[...], ln1b_ref[...], d_hidden)
    x = jnp.maximum(
        jnp.dot(x.astype(mm_dtype), w2_ref[...],
                preferred_element_type=jnp.float32) + b2_ref[...], 0.0)
    x = _layernorm(x, ln2w_ref[...], ln2b_ref[...], d_hidden)

    # ---------------- RNNLayer: recurrent_N-layer GRU, single step --------------
    n_layers, tb, hp = h0_ref.shape
    # Hoist the mask lane-broadcast once (JAX does not CSE broadcast_in_dim).
    mb = jnp.broadcast_to(masks_ref[...], (tb, hp))
    inp = x
    for l in range(n_layers):                     # static unroll over recurrent_N
        h = h0_ref[l] * mb                        # mask resets hidden state, [TB, Hp]
        # Fused gate matmuls: [TB,Hp] @ [Hp,3Hp] (gates r, z, n along lanes).
        gx = jnp.dot(inp.astype(mm_dtype), wih_ref[l],
                     preferred_element_type=jnp.float32) + bih_ref[l]
        gh = jnp.dot(h.astype(mm_dtype), whh_ref[l],
                     preferred_element_type=jnp.float32) + bhh_ref[l]
        # r and z with a single 2*hp-wide sigmoid slab (halved EUP op count).
        rz = _sigmoid(gx[:, :2 * hp] + gh[:, :2 * hp])
        r, z = rz[:, :hp], rz[:, hp:]
        n = jnp.tanh(gx[:, 2 * hp:] + r * gh[:, 2 * hp:])   # PyTorch: n = tanh(xn + r*hn)
        h_new = (1.0 - z) * n + z * h
        hout_ref[l] = h_new
        inp = h_new                               # input of next GRU layer

    # ---------------- RNN output LayerNorm + value head (VPU/XLU, no MXU) -------
    feat = _layernorm(inp, lngw_ref[...], lngb_ref[...], d_hidden)
    values_ref[...] = (jnp.sum(feat * wv_ref[...], axis=-1, keepdims=True)
                       + bv_ref[0, 0])


def pack_params(params, matmul_dtype=jnp.float32):
    """Pad/pack all weights ONCE; cache the result across training steps.

    GRU gate weights are fused to one [Hp, 3*Hp] matrix per layer (2 MXU dots
    per layer instead of 6).  `matmul_dtype=jnp.bfloat16` packs the matmul
    operands in bf16 (native MXU rate on v6e/v7x, halves weight HBM + VMEM);
    LayerNorm / bias / gate math stays f32.
    """
    f32 = jnp.float32
    D, H = params['w1'].shape
    N = params['w_ih'].shape[0]
    Dp, Hp = _round_up(D, 128), _round_up(H, 128)

    def pad2(a, rows, cols, dtype=f32):
        a = a.astype(dtype)
        return jnp.pad(a, ((0, rows - a.shape[0]), (0, cols - a.shape[1])))

    def pack_gate_w(w):        # [N, 3, H, H] -> [N, Hp, 3*Hp]
        w = w.astype(matmul_dtype)
        w = jnp.pad(w, ((0, 0), (0, 0), (0, Hp - w.shape[2]), (0, Hp - w.shape[3])))
        return jnp.transpose(w, (0, 2, 1, 3)).reshape(N, Hp, 3 * Hp)

    def pack_gate_b(b):        # [N, 3, 1, H] -> [N, 1, 3*Hp]
        b = b.astype(f32)
        b = jnp.pad(b, ((0, 0), (0, 0), (0, 0), (0, Hp - b.shape[3])))
        return jnp.transpose(b, (0, 2, 1, 3)).reshape(N, 1, 3 * Hp)

    return dict(
        ln0w=pad2(params['ln0_w'], 1, Dp), ln0b=pad2(params['ln0_b'], 1, Dp),
        w1=pad2(params['w1'], Dp, Hp, matmul_dtype), b1=pad2(params['b1'], 1, Hp),
        ln1w=pad2(params['ln1_w'], 1, Hp), ln1b=pad2(params['ln1_b'], 1, Hp),
        w2=pad2(params['w2'], Hp, Hp, matmul_dtype), b2=pad2(params['b2'], 1, Hp),
        ln2w=pad2(params['ln2_w'], 1, Hp), ln2b=pad2(params['ln2_b'], 1, Hp),
        wih=pack_gate_w(params['w_ih']), whh=pack_gate_w(params['w_hh']),
        bih=pack_gate_b(params['b_ih']), bhh=pack_gate_b(params['b_hh']),
        lngw=pad2(params['lng_w'], 1, Hp), lngb=pad2(params['lng_b'], 1, Hp),
        wv=pad2(jnp.transpose(params['wv']), 1, Hp),      # [1, Hp] row (VPU head)
        bv=params['bv'].astype(f32).reshape(1, 1),        # scalar, lives in SMEM
    )


def r_critic_forward(packed, share_obs, rnn_states, masks, *,
                     batch_tile=512, min_grid_steps=2):
    """share_obs [B, D], rnn_states [N, B, H] (layer-major: keep this layout
    across the rollout to avoid per-step [B,N,H]<->[N,B,H] HBM transposes),
    masks [B, 1] -> (values [B, 1], new_rnn_states [N, B, H])."""
    f32 = jnp.float32
    B, D = share_obs.shape
    N, _, H = rnn_states.shape
    Dp = packed['w1'].shape[0]
    Hp = packed['lngw'].shape[1]

    # Batch tiling: last tile nearly full (no ~2x padding waste just above a
    # tile multiple) and >=2 grid steps so both v7x TensorCores get work on the
    # "parallel" axis.  v5e/v6e have 1 TC; an extra grid step is ~0.35us.
    n_tiles = max(pl.cdiv(B, batch_tile), 1)
    if B > 8:
        n_tiles = max(n_tiles, min_grid_steps)
    TB = _round_up(pl.cdiv(B, n_tiles), 8)      # batch tile, multiple of 8
    Bp = n_tiles * TB
    grid = (n_tiles,)

    # ---- activations: zero-pad rows/lanes (pads are no-ops when aligned) ----
    obs_p = jnp.pad(share_obs.astype(f32), ((0, Bp - B), (0, Dp - D)))     # [Bp, Dp]
    masks_p = jnp.pad(masks.astype(f32), ((0, Bp - B), (0, 0)))            # [Bp, 1]
    h0_p = jnp.pad(rnn_states.astype(f32),
                   ((0, 0), (0, Bp - B), (0, Hp - H)))                     # [N, Bp, Hp]

    inputs = (obs_p, h0_p, masks_p,
              packed['ln0w'], packed['ln0b'],
              packed['w1'], packed['b1'], packed['ln1w'], packed['ln1b'],
              packed['w2'], packed['b2'], packed['ln2w'], packed['ln2b'],
              packed['wih'], packed['whh'], packed['bih'], packed['bhh'],
              packed['lngw'], packed['lngb'],
              packed['wv'], packed['bv'])

    # ---- BlockSpecs: activations tiled over batch, weights VMEM-resident ----
    def act(cols):
        return pl.BlockSpec((TB, cols), lambda i: (i, 0))

    def resident(shape):
        zeros = (0,) * len(shape)
        return pl.BlockSpec(shape, lambda i, z=zeros: z)

    in_specs = [
        act(Dp),                                            # obs
        pl.BlockSpec((N, TB, Hp), lambda i: (0, i, 0)),     # h0 (aliased to hout)
        act(1),                                             # masks
        resident((1, Dp)), resident((1, Dp)),               # ln0 w/b
        resident((Dp, Hp)), resident((1, Hp)), resident((1, Hp)), resident((1, Hp)),
        resident((Hp, Hp)), resident((1, Hp)), resident((1, Hp)), resident((1, Hp)),
        resident((N, Hp, 3 * Hp)), resident((N, Hp, 3 * Hp)),   # fused w_ih, w_hh
        resident((N, 1, 3 * Hp)), resident((N, 1, 3 * Hp)),     # fused b_ih, b_hh
        resident((1, Hp)), resident((1, Hp)),                   # lng w/b
        resident((1, Hp)),                                      # wv row
        pl.BlockSpec(memory_space=pltpu.MemorySpace.SMEM),      # bv scalar in SMEM
    ]
    out_specs = (
        pl.BlockSpec((TB, 1), lambda i: (i, 0)),            # values (keep [B,1]:
                                                            # a 128-wide slab costs
                                                            # 128x write traffic)
        pl.BlockSpec((N, TB, Hp), lambda i: (0, i, 0)),     # new rnn states
    )

    # ---- explicit VMEM budget (v5e scoped default is 16 MiB; cap at v7x 64) ----
    wt_bytes = sum(int(v.size) * v.dtype.itemsize for v in packed.values())
    act_bytes = 4 * (TB * Dp + 2 * N * TB * Hp + 2 * TB)
    gru_live = 4 * (2 * TB * 3 * Hp + 4 * TB * Hp)
    vmem_limit = int(min(64 << 20,
                         max(32 << 20,
                             2 * (wt_bytes + act_bytes) + gru_live + (2 << 20))))

    cost = pl.CostEstimate(
        flops=int(2 * Bp * (Dp * Hp + Hp * Hp + N * 2 * Hp * 3 * Hp) + 30 * Bp * Hp),
        transcendentals=int(Bp * (3 * N * Hp + 4)),
        bytes_accessed=int(4 * (Bp * Dp + 2 * N * Bp * Hp + 2 * Bp) + wt_bytes),
    )

    values_p, hout_p = pl.pallas_call(
        functools.partial(r_critic_kernel, d_obs=D, d_hidden=H),
        grid=grid,
        in_specs=in_specs,
        out_specs=out_specs,
        out_shape=(jax.ShapeDtypeStruct((Bp, 1), f32),
                   jax.ShapeDtypeStruct((N, Bp, Hp), f32)),
        # h0 block i is consumed before hout block i is written back (identical
        # index maps, disjoint blocks per core); reuse its HBM buffer and skip a
        # second [N,Bp,Hp] allocation + write pass.
        input_output_aliases={1: 1},
        compiler_params=pltpu.CompilerParams(
            dimension_semantics=("parallel",),
            vmem_limit_bytes=vmem_limit),
        cost_estimate=cost,
    )(*inputs)

    return values_p[:B], hout_p[:, :B, :H]


def r_critic_forward_bnh(packed, share_obs, rnn_states_bnh, masks, **kw):
    """Module-compatible layout ([B, N, H] state in/out).  Prefer the layer-major
    r_critic_forward in training loops to avoid the two per-step transposes."""
    v, h = r_critic_forward(packed, share_obs,
                            jnp.transpose(rnn_states_bnh, (1, 0, 2)), masks, **kw)
    return v, jnp.transpose(h, (1, 0, 2))


def r_critic_reference(params, share_obs, rnn_states, masks):
    """Pure-JAX reference (mirrors the PyTorch module); rnn_states [B, N, H]."""
    def ln(x, w, b, eps=1e-5):
        mu = jnp.mean(x, -1, keepdims=True)
        var = jnp.mean((x - mu) ** 2, -1, keepdims=True)
        return (x - mu) / jnp.sqrt(var + eps) * w + b

    x = ln(share_obs, params['ln0_w'], params['ln0_b'])
    x = jax.nn.relu(x @ params['w1'] + params['b1'])
    x = ln(x, params['ln1_w'], params['ln1_b'])
    x = jax.nn.relu(x @ params['w2'] + params['b2'])
    x = ln(x, params['ln2_w'], params['ln2_b'])

    h0 = jnp.transpose(rnn_states, (1, 0, 2))
    inp, houts = x, []
    for l in range(h0.shape[0]):
        h = h0[l] * masks
        xr = inp @ params['w_ih'][l, 0] + params['b_ih'][l, 0]
        xz = inp @ params['w_ih'][l, 1] + params['b_ih'][l, 1]
        xn = inp @ params['w_ih'][l, 2] + params['b_ih'][l, 2]
        hr = h @ params['w_hh'][l, 0] + params['b_hh'][l, 0]
        hz = h @ params['w_hh'][l, 1] + params['b_hh'][l, 1]
        hn = h @ params['w_hh'][l, 2] + params['b_hh'][l, 2]
        r = jax.nn.sigmoid(xr + hr)
        z = jax.nn.sigmoid(xz + hz)
        n = jnp.tanh(xn + r * hn)
        h_new = (1.0 - z) * n + z * h
        houts.append(h_new)
        inp = h_new
    feat = ln(inp, params['lng_w'], params['lng_b'])
    values = feat @ params['wv'] + params['bv']
    return values, jnp.stack(houts, axis=1)


def init_params(key, obs_dim, hidden, recurrent_N):
    ks = jax.random.split(key, 8)

    def xavier(k, fan_in, fan_out):
        bound = (6.0 / (fan_in + fan_out)) ** 0.5
        return jax.random.uniform(k, (fan_in, fan_out), jnp.float32, -bound, bound)

    gru_bound = (1.0 / hidden) ** 0.5
    return dict(
        ln0_w=jnp.ones((1, obs_dim), jnp.float32), ln0_b=jnp.zeros((1, obs_dim), jnp.float32),
        w1=xavier(ks[0], obs_dim, hidden), b1=jnp.zeros((1, hidden), jnp.float32),
        ln1_w=jnp.ones((1, hidden), jnp.float32), ln1_b=jnp.zeros((1, hidden), jnp.float32),
        w2=xavier(ks[1], hidden, hidden), b2=jnp.zeros((1, hidden), jnp.float32),
        ln2_w=jnp.ones((1, hidden), jnp.float32), ln2_b=jnp.zeros((1, hidden), jnp.float32),
        w_ih=jax.random.uniform(ks[2], (recurrent_N, 3, hidden, hidden), jnp.float32,
                                -gru_bound, gru_bound),
        w_hh=jax.random.uniform(ks[3], (recurrent_N, 3, hidden, hidden), jnp.float32,
                                -gru_bound, gru_bound),
        b_ih=jax.random.uniform(ks[4], (recurrent_N, 3, 1, hidden), jnp.float32,
                                -gru_bound, gru_bound),
        b_hh=jax.random.uniform(ks[5], (recurrent_N, 3, 1, hidden), jnp.float32,
                                -gru_bound, gru_bound),
        lng_w=jnp.ones((1, hidden), jnp.float32), lng_b=jnp.zeros((1, hidden), jnp.float32),
        wv=xavier(ks[6], hidden, 1), bv=jnp.zeros((1, 1), jnp.float32),  # v_out bias = 0
    )


if __name__ == "__main__":
    B, OBS_DIM, HIDDEN, RECURRENT_N = 8, 24, 32, 2

    key = jax.random.PRNGKey(0)
    k_obs, k_h, k_m, k_p = jax.random.split(key, 4)

    share_obs = jax.random.normal(k_obs, (B, OBS_DIM), jnp.float32)
    rnn_states_bnh = jax.random.normal(k_h, (B, RECURRENT_N, HIDDEN), jnp.float32)
    masks = (jax.random.uniform(k_m, (B, 1)) > 0.3).astype(jnp.float32)

    params = init_params(k_p, OBS_DIM, HIDDEN, RECURRENT_N)

    # Pack/pad weights ONCE (cache across steps); keep rnn state layer-major
    # [N, B, H] across the rollout (single conversion here, not per step).
    packed = pack_params(params)
    rnn_states = jnp.transpose(rnn_states_bnh, (1, 0, 2))

    fwd = jax.jit(r_critic_forward)
    values, new_states = fwd(packed, share_obs, rnn_states, masks)
    jax.block_until_ready((values, new_states))

    assert values.shape == (B, 1)
    assert new_states.shape == (RECURRENT_N, B, HIDDEN)

    # Numerical check against the pure-JAX reference (exact f32 path).
    v_ref, h_ref_bnh = r_critic_reference(params, share_obs, rnn_states_bnh, masks)
    h_ref = jnp.transpose(h_ref_bnh, (1, 0, 2))
    assert jnp.allclose(values, v_ref, rtol=1e-4, atol=1e-4), (values, v_ref)
    assert jnp.allclose(new_states, h_ref, rtol=1e-4, atol=1e-4)

    # bf16 MXU-operand fast path (v6e/v7x); elementwise math stays f32.
    packed_bf16 = pack_params(params, matmul_dtype=jnp.bfloat16)
    v16, h16 = fwd(packed_bf16, share_obs, rnn_states, masks)
    jax.block_until_ready((v16, h16))
    assert jnp.allclose(v16, v_ref, rtol=1e-1, atol=1e-1)
    assert jnp.allclose(h16, h_ref, rtol=1e-1, atol=1e-1)

    print("KERNEL_OK")
</pallas_src>

<mosaic_0001>
module attributes {stable_mosaic.version = 11 : i64} {
  func.func @r_critic_kernel(%arg0: i32, %arg1: memref<8x128xf32, #tpu.memory_space<vmem>>, %arg2: memref<2x8x128xf32, #tpu.memory_space<vmem>>, %arg3: memref<8x1xf32, #tpu.memory_space<vmem>>, %arg4: memref<1x128xf32, #tpu.memory_space<vmem>>, %arg5: memref<1x128xf32, #tpu.memory_space<vmem>>, %arg6: memref<128x128xf32, #tpu.memory_space<vmem>>, %arg7: memref<1x128xf32, #tpu.memory_space<vmem>>, %arg8: memref<1x128xf32, #tpu.memory_space<vmem>>, %arg9: memref<1x128xf32, #tpu.memory_space<vmem>>, %arg10: memref<128x128xf32, #tpu.memory_space<vmem>>, %arg11: memref<1x128xf32, #tpu.memory_space<vmem>>, %arg12: memref<1x128xf32, #tpu.memory_space<vmem>>, %arg13: memref<1x128xf32, #tpu.memory_space<vmem>>, %arg14: memref<2x128x384xf32, #tpu.memory_space<vmem>>, %arg15: memref<2x128x384xf32, #tpu.memory_space<vmem>>, %arg16: memref<2x1x384xf32, #tpu.memory_space<vmem>>, %arg17: memref<2x1x384xf32, #tpu.memory_space<vmem>>, %arg18: memref<1x128xf32, #tpu.memory_space<vmem>>, %arg19: memref<1x128xf32, #tpu.memory_space<vmem>>, %arg20: memref<1x128xf32, #tpu.memory_space<vmem>>, %arg21: memref<1x1xf32, #tpu.memory_space<smem>>, %arg22: memref<8x1xf32, #tpu.memory_space<vmem>>, %arg23: memref<2x8x128xf32, #tpu.memory_space<vmem>>) attributes {dimension_semantics = [#tpu.dimension_semantics<parallel>], iteration_bounds = array<i64: 1>, scalar_prefetch = 0 : i64, scratch_operands = 0 : i64, tpu.core_type = #tpu.core_type<tc>, window_params = [{transform_indices = @transform_0, window_bounds = array<i64: 8, 128>}, {transform_indices = @transform_1, window_bounds = array<i64: 2, 8, 128>}, {transform_indices = @transform_2, window_bounds = array<i64: 8, 1>}, {pipeline_mode = #tpu.pipeline_mode<synchronous>, transform_indices = @transform_3, window_bounds = array<i64: 1, 128>}, {pipeline_mode = #tpu.pipeline_mode<synchronous>, transform_indices = @transform_4, window_bounds = array<i64: 1, 128>}, {pipeline_mode = #tpu.pipeline_mode<synchronous>, transform_indices = @transform_5, window_bounds = array<i64: 128, 128>}, {pipeline_mode = #tpu.pipeline_mode<synchronous>, transform_indices = @transform_6, window_bounds = array<i64: 1, 128>}, {pipeline_mode = #tpu.pipeline_mode<synchronous>, transform_indices = @transform_7, window_bounds = array<i64: 1, 128>}, {pipeline_mode = #tpu.pipeline_mode<synchronous>, transform_indices = @transform_8, window_bounds = array<i64: 1, 128>}, {pipeline_mode = #tpu.pipeline_mode<synchronous>, transform_indices = @transform_9, window_bounds = array<i64: 128, 128>}, {pipeline_mode = #tpu.pipeline_mode<synchronous>, transform_indices = @transform_10, window_bounds = array<i64: 1, 128>}, {pipeline_mode = #tpu.pipeline_mode<synchronous>, transform_indices = @transform_11, window_bounds = array<i64: 1, 128>}, {pipeline_mode = #tpu.pipeline_mode<synchronous>, transform_indices = @transform_12, window_bounds = array<i64: 1, 128>}, {pipeline_mode = #tpu.pipeline_mode<synchronous>, transform_indices = @transform_13, window_bounds = array<i64: 2, 128, 384>}, {pipeline_mode = #tpu.pipeline_mode<synchronous>, transform_indices = @transform_14, window_bounds = array<i64: 2, 128, 384>}, {pipeline_mode = #tpu.pipeline_mode<synchronous>, transform_indices = @transform_15, window_bounds = array<i64: 2, 1, 384>}, {pipeline_mode = #tpu.pipeline_mode<synchronous>, transform_indices = @transform_16, window_bounds = array<i64: 2, 1, 384>}, {pipeline_mode = #tpu.pipeline_mode<synchronous>, transform_indices = @transform_17, window_bounds = array<i64: 1, 128>}, {pipeline_mode = #tpu.pipeline_mode<synchronous>, transform_indices = @transform_18, window_bounds = array<i64: 1, 128>}, {pipeline_mode = #tpu.pipeline_mode<synchronous>, transform_indices = @transform_19, window_bounds = array<i64: 1, 128>}, {transform_indices = @transform_20, window_bounds = array<i64: 1, 1>}, {transform_indices = @transform_21, window_bounds = array<i64: 8, 1>}, {transform_indices = @transform_22, window_bounds = array<i64: 2, 8, 128>}]} {
    %c0 = arith.constant 0 : index
    %c0_0 = arith.constant 0 : index
    %0 = vector.load %arg1[%c0, %c0_0] : memref<8x128xf32, #tpu.memory_space<vmem>>, vector<8x128xf32>
    %c0_1 = arith.constant 0 : index
    %c0_2 = arith.constant 0 : index
    %1 = vector.load %arg4[%c0_1, %c0_2] : memref<1x128xf32, #tpu.memory_space<vmem>>, vector<1x128xf32>
    %c0_3 = arith.constant 0 : index
    %c0_4 = arith.constant 0 : index
    %2 = vector.load %arg5[%c0_3, %c0_4] : memref<1x128xf32, #tpu.memory_space<vmem>>, vector<1x128xf32>
    %cst = arith.constant dense<0.000000e+00> : vector<8xf32>
    %3 = vector.multi_reduction <add>, %0, %cst [1] : vector<8x128xf32> to vector<8xf32>
    %4 = vector.shape_cast %3 : vector<8xf32> to vector<8x1xf32>
    %cst_5 = arith.constant 0.0416666679 : f32
    %5 = vector.broadcast %cst_5 : f32 to vector<8x1xf32>
    %6 = arith.mulf %4, %5 : vector<8x1xf32>
    %7 = vector.broadcast %6 : vector<8x1xf32> to vector<8x128xf32>
    %8 = arith.subf %0, %7 : vector<8x128xf32>
    %9 = tpu.iota {dimensions = array<i32: 1>} : vector<8x128xi32>
    %c24_i32 = arith.constant 24 : i32
    %10 = vector.broadcast %c24_i32 : i32 to vector<8x128xi32>
    %11 = arith.cmpi slt, %9, %10 : vector<8x128xi32>
    %cst_6 = arith.constant 0.000000e+00 : f32
    %12 = vector.broadcast %cst_6 : f32 to vector<8x128xf32>
    %13 = arith.select %11, %8, %12 : vector<8x128xi1>, vector<8x128xf32>
    %14 = arith.mulf %13, %13 : vector<8x128xf32>
    %cst_7 = arith.constant dense<0.000000e+00> : vector<8xf32>
    %15 = vector.multi_reduction <add>, %14, %cst_7 [1] : vector<8x128xf32> to vector<8xf32>
    %16 = vector.shape_cast %15 : vector<8xf32> to vector<8x1xf32>
    %cst_8 = arith.constant 0.0416666679 : f32
    %17 = vector.broadcast %cst_8 : f32 to vector<8x1xf32>
    %18 = arith.mulf %16, %17 : vector<8x1xf32>
    %cst_9 = arith.constant 9.99999974E-6 : f32
    %19 = vector.broadcast %cst_9 : f32 to vector<8x1xf32>
    %20 = arith.addf %18, %19 : vector<8x1xf32>
    %21 = math.rsqrt %20 : vector<8x1xf32>
    %22 = vector.broadcast %21 : vector<8x1xf32> to vector<8x128xf32>
    %23 = arith.mulf %13, %22 : vector<8x128xf32>
    %24 = vector.broadcast %1 : vector<1x128xf32> to vector<8x128xf32>
    %25 = arith.mulf %23, %24 : vector<8x128xf32>
    %26 = vector.broadcast %2 : vector<1x128xf32> to vector<8x128xf32>
    %27 = arith.addf %25, %26 : vector<8x128xf32>
    %c0_10 = arith.constant 0 : index
    %c0_11 = arith.constant 0 : index
    %28 = vector.load %arg6[%c0_10, %c0_11] : memref<128x128xf32, #tpu.memory_space<vmem>>, vector<128x128xf32>
    %cst_12 = arith.constant dense<0.000000e+00> : vector<8x128xf32>
    %29 = tpu.matmul %27, %28, %cst_12 {dimension_numbers = #tpu.dot_dimension_numbers<[1], [0], [0], [1], [0, 0, 1, 1], [], []>} : vector<8x128xf32>, vector<128x128xf32>, vector<8x128xf32> -> vector<8x128xf32>
    %c0_13 = arith.constant 0 : index
    %c0_14 = arith.constant 0 : index
    %30 = vector.load %arg7[%c0_13, %c0_14] : memref<1x128xf32, #tpu.memory_space<vmem>>, vector<1x128xf32>
    %31 = vector.broadcast %30 : vector<1x128xf32> to vector<8x128xf32>
    %32 = arith.addf %29, %31 : vector<8x128xf32>
    %cst_15 = arith.constant 0.000000e+00 : f32
    %33 = vector.broadcast %cst_15 : f32 to vector<8x128xf32>
    %34 = arith.maximumf %32, %33 : vector<8x128xf32>
    %c0_16 = arith.constant 0 : index
    %c0_17 = arith.constant 0 : index
    %35 = vector.load %arg8[%c0_16, %c0_17] : memref<1x128xf32, #tpu.memory_space<vmem>>, vector<1x128xf32>
    %c0_18 = arith.constant 0 : index
    %c0_19 = arith.constant 0 : index
    %36 = vector.load %arg9[%c0_18, %c0_19] : memref<1x128xf32, #tpu.memory_space<vmem>>, vector<1x128xf32>
    %cst_20 = arith.constant dense<0.000000e+00> : vector<8xf32>
    %37 = vector.multi_reduction <add>, %34, %cst_20 [1] : vector<8x128xf32> to vector<8xf32>
    %38 = vector.shape_cast %37 : vector<8xf32> to vector<8x1xf32>
    %cst_21 = arith.constant 3.125000e-02 : f32
    %39 = vector.broadcast %cst_21 : f32 to vector<8x1xf32>
    %40 = arith.mulf %38, %39 : vector<8x1xf32>
    %41 = vector.broadcast %40 : vector<8x1xf32> to vector<8x128xf32>
    %42 = arith.subf %34, %41 : vector<8x128xf32>
    %43 = tpu.iota {dimensions = array<i32: 1>} : vector<8x128xi32>
    %c32_i32 = arith.constant 32 : i32
    %44 = vector.broadcast %c32_i32 : i32 to vector<8x128xi32>
    %45 = arith.cmpi slt, %43, %44 : vector<8x128xi32>
    %cst_22 = arith.constant 0.000000e+00 : f32
    %46 = vector.broadcast %cst_22 : f32 to vector<8x128xf32>
    %47 = arith.select %45, %42, %46 : vector<8x128xi1>, vector<8x128xf32>
    %48 = arith.mulf %47, %47 : vector<8x128xf32>
    %cst_23 = arith.constant dense<0.000000e+00> : vector<8xf32>
    %49 = vector.multi_reduction <add>, %48, %cst_23 [1] : vector<8x128xf32> to vector<8xf32>
    %50 = vector.shape_cast %49 : vector<8xf32> to vector<8x1xf32>
    %cst_24 = arith.constant 3.125000e-02 : f32
    %51 = vector.broadcast %cst_24 : f32 to vector<8x1xf32>
    %52 = arith.mulf %50, %51 : vector<8x1xf32>
    %cst_25 = arith.constant 9.99999974E-6 : f32
    %53 = vector.broadcast %cst_25 : f32 to vector<8x1xf32>
    %54 = arith.addf %52, %53 : vector<8x1xf32>
    %55 = math.rsqrt %54 : vector<8x1xf32>
    %56 = vector.broadcast %55 : vector<8x1xf32> to vector<8x128xf32>
    %57 = arith.mulf %47, %56 : vector<8x128xf32>
    %58 = vector.broadcast %35 : vector<1x128xf32> to vector<8x128xf32>
    %59 = arith.mulf %57, %58 : vector<8x128xf32>
    %60 = vector.broadcast %36 : vector<1x128xf32> to vector<8x128xf32>
    %61 = arith.addf %59, %60 : vector<8x128xf32>
    %c0_26 = arith.constant 0 : index
    %c0_27 = arith.constant 0 : index
    %62 = vector.load %arg10[%c0_26, %c0_27] : memref<128x128xf32, #tpu.memory_space<vmem>>, vector<128x128xf32>
    %cst_28 = arith.constant dense<0.000000e+00> : vector<8x128xf32>
    %63 = tpu.matmul %61, %62, %cst_28 {dimension_numbers = #tpu.dot_dimension_numbers<[1], [0], [0], [1], [0, 0, 1, 1], [], []>} : vector<8x128xf32>, vector<128x128xf32>, vector<8x128xf32> -> vector<8x128xf32>
    %c0_29 = arith.constant 0 : index
    %c0_30 = arith.constant 0 : index
    %64 = vector.load %arg11[%c0_29, %c0_30] : memref<1x128xf32, #tpu.memory_space<vmem>>, vector<1x128xf32>
    %65 = vector.broadcast %64 : vector<1x128xf32> to vector<8x128xf32>
    %66 = arith.addf %63, %65 : vector<8x128xf32>
    %cst_31 = arith.constant 0.000000e+00 : f32
    %67 = vector.broadcast %cst_31 : f32 to vector<8x128xf32>
    %68 = arith.maximumf %66, %67 : vector<8x128xf32>
    %c0_32 = arith.constant 0 : index
    %c0_33 = arith.constant 0 : index
    %69 = vector.load %arg12[%c0_32, %c0_33] : memref<1x128xf32, #tpu.memory_space<vmem>>, vector<1x128xf32>
    %c0_34 = arith.constant 0 : index
    %c0_35 = arith.constant 0 : index
    %70 = vector.load %arg13[%c0_34, %c0_35] : memref<1x128xf32, #tpu.memory_space<vmem>>, vector<1x128xf32>
    %cst_36 = arith.constant dense<0.000000e+00> : vector<8xf32>
    %71 = vector.multi_reduction <add>, %68, %cst_36 [1] : vector<8x128xf32> to vector<8xf32>
    %72 = vector.shape_cast %71 : vector<8xf32> to vector<8x1xf32>
    %cst_37 = arith.constant 3.125000e-02 : f32
    %73 = vector.broadcast %cst_37 : f32 to vector<8x1xf32>
    %74 = arith.mulf %72, %73 : vector<8x1xf32>
    %75 = vector.broadcast %74 : vector<8x1xf32> to vector<8x128xf32>
    %76 = arith.subf %68, %75 : vector<8x128xf32>
    %77 = tpu.iota {dimensions = array<i32: 1>} : vector<8x128xi32>
    %c32_i32_38 = arith.constant 32 : i32
    %78 = vector.broadcast %c32_i32_38 : i32 to vector<8x128xi32>
    %79 = arith.cmpi slt, %77, %78 : vector<8x128xi32>
    %cst_39 = arith.constant 0.000000e+00 : f32
    %80 = vector.broadcast %cst_39 : f32 to vector<8x128xf32>
    %81 = arith.select %79, %76, %80 : vector<8x128xi1>, vector<8x128xf32>
    %82 = arith.mulf %81, %81 : vector<8x128xf32>
    %cst_40 = arith.constant dense<0.000000e+00> : vector<8xf32>
    %83 = vector.multi_reduction <add>, %82, %cst_40 [1] : vector<8x128xf32> to vector<8xf32>
    %84 = vector.shape_cast %83 : vector<8xf32> to vector<8x1xf32>
    %cst_41 = arith.constant 3.125000e-02 : f32
    %85 = vector.broadcast %cst_41 : f32 to vector<8x1xf32>
    %86 = arith.mulf %84, %85 : vector<8x1xf32>
    %cst_42 = arith.constant 9.99999974E-6 : f32
    %87 = vector.broadcast %cst_42 : f32 to vector<8x1xf32>
    %88 = arith.addf %86, %87 : vector<8x1xf32>
    %89 = math.rsqrt %88 : vector<8x1xf32>
    %90 = vector.broadcast %89 : vector<8x1xf32> to vector<8x128xf32>
    %91 = arith.mulf %81, %90 : vector<8x128xf32>
    %92 = vector.broadcast %69 : vector<1x128xf32> to vector<8x128xf32>
    %93 = arith.mulf %91, %92 : vector<8x128xf32>
    %94 = vector.broadcast %70 : vector<1x128xf32> to vector<8x128xf32>
    %95 = arith.addf %93, %94 : vector<8x128xf32>
    %c0_43 = arith.constant 0 : index
    %c0_44 = arith.constant 0 : index
    %96 = vector.load %arg3[%c0_43, %c0_44] : memref<8x1xf32, #tpu.memory_space<vmem>>, vector<8x1xf32>
    %97 = vector.shape_cast %96 : vector<8x1xf32> to vector<8x1xf32>
    %98 = vector.broadcast %97 : vector<8x1xf32> to vector<8x128xf32>
    %c0_45 = arith.constant 0 : index
    %c0_46 = arith.constant 0 : index
    %c0_47 = arith.constant 0 : index
    %99 = vector.load %arg2[%c0_45, %c0_46, %c0_47] : memref<2x8x128xf32, #tpu.memory_space<vmem>>, vector<1x8x128xf32>
    %100 = vector.shape_cast %99 : vector<1x8x128xf32> to vector<8x128xf32>
    %101 = arith.mulf %100, %98 : vector<8x128xf32>
    %c0_48 = arith.constant 0 : index
    %c0_49 = arith.constant 0 : index
    %c0_50 = arith.constant 0 : index
    %102 = vector.load %arg14[%c0_48, %c0_49, %c0_50] : memref<2x128x384xf32, #tpu.memory_space<vmem>>, vector<1x128x384xf32>
    %103 = vector.shape_cast %102 : vector<1x128x384xf32> to vector<128x384xf32>
    %cst_51 = arith.constant dense<0.000000e+00> : vector<8x384xf32>
    %104 = tpu.matmul %95, %103, %cst_51 {dimension_numbers = #tpu.dot_dimension_numbers<[1], [0], [0], [1], [0, 0, 1, 1], [], []>} : vector<8x128xf32>, vector<128x384xf32>, vector<8x384xf32> -> vector<8x384xf32>
    %c0_52 = arith.constant 0 : index
    %c0_53 = arith.constant 0 : index
    %c0_54 = arith.constant 0 : index
    %105 = vector.load %arg16[%c0_52, %c0_53, %c0_54] : memref<2x1x384xf32, #tpu.memory_space<vmem>>, vector<1x1x384xf32>
    %106 = vector.shape_cast %105 : vector<1x1x384xf32> to vector<1x384xf32>
    %107 = vector.broadcast %106 : vector<1x384xf32> to vector<8x384xf32>
    %108 = arith.addf %104, %107 : vector<8x384xf32>
    %c0_55 = arith.constant 0 : index
    %c0_56 = arith.constant 0 : index
    %c0_57 = arith.constant 0 : index
    %109 = vector.load %arg15[%c0_55, %c0_56, %c0_57] : memref<2x128x384xf32, #tpu.memory_space<vmem>>, vector<1x128x384xf32>
    %110 = vector.shape_cast %109 : vector<1x128x384xf32> to vector<128x384xf32>
    %cst_58 = arith.constant dense<0.000000e+00> : vector<8x384xf32>
    %111 = tpu.matmul %101, %110, %cst_58 {dimension_numbers = #tpu.dot_dimension_numbers<[1], [0], [0], [1], [0, 0, 1, 1], [], []>} : vector<8x128xf32>, vector<128x384xf32>, vector<8x384xf32> -> vector<8x384xf32>
    %c0_59 = arith.constant 0 : index
    %c0_60 = arith.constant 0 : index
    %c0_61 = arith.constant 0 : index
    %112 = vector.load %arg17[%c0_59, %c0_60, %c0_61] : memref<2x1x384xf32, #tpu.memory_space<vmem>>, vector<1x1x384xf32>
    %113 = vector.shape_cast %112 : vector<1x1x384xf32> to vector<1x384xf32>
    %114 = vector.broadcast %113 : vector<1x384xf32> to vector<8x384xf32>
    %115 = arith.addf %111, %114 : vector<8x384xf32>
    %116 = vector.extract_strided_slice %108 {offsets = [0, 0], sizes = [8, 256], strides = [1, 1]} : vector<8x384xf32> to vector<8x256xf32>
    %117 = vector.extract_strided_slice %115 {offsets = [0, 0], sizes = [8, 256], strides = [1, 1]} : vector<8x384xf32> to vector<8x256xf32>
    %118 = arith.addf %116, %117 : vector<8x256xf32>
    %cst_62 = arith.constant 5.000000e-01 : f32
    %119 = vector.broadcast %cst_62 : f32 to vector<8x256xf32>
    %120 = arith.mulf %119, %118 : vector<8x256xf32>
    %121 = math.tanh %120 : vector<8x256xf32>
    %cst_63 = arith.constant 5.000000e-01 : f32
    %122 = vector.broadcast %cst_63 : f32 to vector<8x256xf32>
    %123 = arith.mulf %122, %121 : vector<8x256xf32>
    %cst_64 = arith.constant 5.000000e-01 : f32
    %124 = vector.broadcast %cst_64 : f32 to vector<8x256xf32>
    %125 = arith.addf %123, %124 : vector<8x256xf32>
    %126 = vector.extract_strided_slice %125 {offsets = [0, 0], sizes = [8, 128], strides = [1, 1]} : vector<8x256xf32> to vector<8x128xf32>
    %127 = vector.extract_strided_slice %125 {offsets = [0, 128], sizes = [8, 128], strides = [1, 1]} : vector<8x256xf32> to vector<8x128xf32>
    %128 = vector.extract_strided_slice %108 {offsets = [0, 256], sizes = [8, 128], strides = [1, 1]} : vector<8x384xf32> to vector<8x128xf32>
    %129 = vector.extract_strided_slice %115 {offsets = [0, 256], sizes = [8, 128], strides = [1, 1]} : vector<8x384xf32> to vector<8x128xf32>
    %130 = arith.mulf %126, %129 : vector<8x128xf32>
    %131 = arith.addf %128, %130 : vector<8x128xf32>
    %132 = math.tanh %131 : vector<8x128xf32>
    %cst_65 = arith.constant 1.000000e+00 : f32
    %133 = vector.broadcast %cst_65 : f32 to vector<8x128xf32>
    %134 = arith.subf %133, %127 : vector<8x128xf32>
    %135 = arith.mulf %134, %132 : vector<8x128xf32>
    %136 = arith.mulf %127, %101 : vector<8x128xf32>
    %137 = arith.addf %135, %136 : vector<8x128xf32>
    %c0_66 = arith.constant 0 : index
    %c0_67 = arith.constant 0 : index
    %c0_68 = arith.constant 0 : index
    %138 = vector.load %arg23[%c0_66, %c0_67, %c0_68] : memref<2x8x128xf32, #tpu.memory_space<vmem>>, vector<1x8x128xf32>
    %139 = vector.shape_cast %138 : vector<1x8x128xf32> to vector<8x128xf32>
    %140 = vector.shape_cast %137 : vector<8x128xf32> to vector<1x8x128xf32>
    tpu.vector_store %arg23[%c0_66, %c0_67, %c0_68], %140 {strides = array<i32>} : memref<2x8x128xf32, #tpu.memory_space<vmem>>, vector<1x8x128xf32>,
    %c1 = arith.constant 1 : index
    %c0_69 = arith.constant 0 : index
    %c0_70 = arith.constant 0 : index
    %141 = vector.load %arg2[%c1, %c0_69, %c0_70] : memref<2x8x128xf32, #tpu.memory_space<vmem>>, vector<1x8x128xf32>
    %142 = vector.shape_cast %141 : vector<1x8x128xf32> to vector<8x128xf32>
    %143 = arith.mulf %142, %98 : vector<8x128xf32>
    %c1_71 = arith.constant 1 : index
    %c0_72 = arith.constant 0 : index
    %c0_73 = arith.constant 0 : index
    %144 = vector.load %arg14[%c1_71, %c0_72, %c0_73] : memref<2x128x384xf32, #tpu.memory_space<vmem>>, vector<1x128x384xf32>
    %145 = vector.shape_cast %144 : vector<1x128x384xf32> to vector<128x384xf32>
    %cst_74 = arith.constant dense<0.000000e+00> : vector<8x384xf32>
    %146 = tpu.matmul %137, %145, %cst_74 {dimension_numbers = #tpu.dot_dimension_numbers<[1], [0], [0], [1], [0, 0, 1, 1], [], []>} : vector<8x128xf32>, vector<128x384xf32>, vector<8x384xf32> -> vector<8x384xf32>
    %c1_75 = arith.constant 1 : index
    %c0_76 = arith.constant 0 : index
    %c0_77 = arith.constant 0 : index
    %147 = vector.load %arg16[%c1_75, %c0_76, %c0_77] : memref<2x1x384xf32, #tpu.memory_space<vmem>>, vector<1x1x384xf32>
    %148 = vector.shape_cast %147 : vector<1x1x384xf32> to vector<1x384xf32>
    %149 = vector.broadcast %148 : vector<1x384xf32> to vector<8x384xf32>
    %150 = arith.addf %146, %149 : vector<8x384xf32>
    %c1_78 = arith.constant 1 : index
    %c0_79 = arith.constant 0 : index
    %c0_80 = arith.constant 0 : index
    %151 = vector.load %arg15[%c1_78, %c0_79, %c0_80] : memref<2x128x384xf32, #tpu.memory_space<vmem>>, vector<1x128x384xf32>
    %152 = vector.shape_cast %151 : vector<1x128x384xf32> to vector<128x384xf32>
    %cst_81 = arith.constant dense<0.000000e+00> : vector<8x384xf32>
    %153 = tpu.matmul %143, %152, %cst_81 {dimension_numbers = #tpu.dot_dimension_numbers<[1], [0], [0], [1], [0, 0, 1, 1], [], []>} : vector<8x128xf32>, vector<128x384xf32>, vector<8x384xf32> -> vector<8x384xf32>
    %c1_82 = arith.constant 1 : index
    %c0_83 = arith.constant 0 : index
    %c0_84 = arith.constant 0 : index
    %154 = vector.load %arg17[%c1_82, %c0_83, %c0_84] : memref<2x1x384xf32, #tpu.memory_space<vmem>>, vector<1x1x384xf32>
    %155 = vector.shape_cast %154 : vector<1x1x384xf32> to vector<1x384xf32>
    %156 = vector.broadcast %155 : vector<1x384xf32> to vector<8x384xf32>
    %157 = arith.addf %153, %156 : vector<8x384xf32>
    %158 = vector.extract_strided_slice %150 {offsets = [0, 0], sizes = [8, 256], strides = [1, 1]} : vector<8x384xf32> to vector<8x256xf32>
    %159 = vector.extract_strided_slice %157 {offsets = [0, 0], sizes = [8, 256], strides = [1, 1]} : vector<8x384xf32> to vector<8x256xf32>
    %160 = arith.addf %158, %159 : vector<8x256xf32>
    %cst_85 = arith.constant 5.000000e-01 : f32
    %161 = vector.broadcast %cst_85 : f32 to vector<8x256xf32>
    %162 = arith.mulf %161, %160 : vector<8x256xf32>
    %163 = math.tanh %162 : vector<8x256xf32>
    %cst_86 = arith.constant 5.000000e-01 : f32
    %164 = vector.broadcast %cst_86 : f32 to vector<8x256xf32>
    %165 = arith.mulf %164, %163 : vector<8x256xf32>
    %cst_87 = arith.constant 5.000000e-01 : f32
    %166 = vector.broadcast %cst_87 : f32 to vector<8x256xf32>
    %167 = arith.addf %165, %166 : vector<8x256xf32>
    %168 = vector.extract_strided_slice %167 {offsets = [0, 0], sizes = [8, 128], strides = [1, 1]} : vector<8x256xf32> to vector<8x128xf32>
    %169 = vector.extract_strided_slice %167 {offsets = [0, 128], sizes = [8, 128], strides = [1, 1]} : vector<8x256xf32> to vector<8x128xf32>
    %170 = vector.extract_strided_slice %150 {offsets = [0, 256], sizes = [8, 128], strides = [1, 1]} : vector<8x384xf32> to vector<8x128xf32>
    %171 = vector.extract_strided_slice %157 {offsets = [0, 256], sizes = [8, 128], strides = [1, 1]} : vector<8x384xf32> to vector<8x128xf32>
    %172 = arith.mulf %168, %171 : vector<8x128xf32>
    %173 = arith.addf %170, %172 : vector<8x128xf32>
    %174 = math.tanh %173 : vector<8x128xf32>
    %cst_88 = arith.constant 1.000000e+00 : f32
    %175 = vector.broadcast %cst_88 : f32 to vector<8x128xf32>
    %176 = arith.subf %175, %169 : vector<8x128xf32>
    %177 = arith.mulf %176, %174 : vector<8x128xf32>
    %178 = arith.mulf %169, %143 : vector<8x128xf32>
    %179 = arith.addf %177, %178 : vector<8x128xf32>
    %c1_89 = arith.constant 1 : index
    %c0_90 = arith.constant 0 : index
    %c0_91 = arith.constant 0 : index
    %180 = vector.load %arg23[%c1_89, %c0_90, %c0_91] : memref<2x8x128xf32, #tpu.memory_space<vmem>>, vector<1x8x128xf32>
    %181 = vector.shape_cast %180 : vector<1x8x128xf32> to vector<8x128xf32>
    %182 = vector.shape_cast %179 : vector<8x128xf32> to vector<1x8x128xf32>
    tpu.vector_store %arg23[%c1_89, %c0_90, %c0_91], %182 {strides = array<i32>} : memref<2x8x128xf32, #tpu.memory_space<vmem>>, vector<1x8x128xf32>,
    %c0_92 = arith.constant 0 : index
    %c0_93 = arith.constant 0 : index
    %183 = vector.load %arg18[%c0_92, %c0_93] : memref<1x128xf32, #tpu.memory_space<vmem>>, vector<1x128xf32>
    %c0_94 = arith.constant 0 : index
    %c0_95 = arith.constant 0 : index
    %184 = vector.load %arg19[%c0_94, %c0_95] : memref<1x128xf32, #tpu.memory_space<vmem>>, vector<1x128xf32>
    %cst_96 = arith.constant dense<0.000000e+00> : vector<8xf32>
    %185 = vector.multi_reduction <add>, %179, %cst_96 [1] : vector<8x128xf32> to vector<8xf32>
    %186 = vector.shape_cast %185 : vector<8xf32> to vector<8x1xf32>
    %cst_97 = arith.constant 3.125000e-02 : f32
    %187 = vector.broadcast %cst_97 : f32 to vector<8x1xf32>
    %188 = arith.mulf %186, %187 : vector<8x1xf32>
    %189 = vector.broadcast %188 : vector<8x1xf32> to vector<8x128xf32>
    %190 = arith.subf %179, %189 : vector<8x128xf32>
    %191 = tpu.iota {dimensions = array<i32: 1>} : vector<8x128xi32>
    %c32_i32_98 = arith.constant 32 : i32
    %192 = vector.broadcast %c32_i32_98 : i32 to vector<8x128xi32>
    %193 = arith.cmpi slt, %191, %192 : vector<8x128xi32>
    %cst_99 = arith.constant 0.000000e+00 : f32
    %194 = vector.broadcast %cst_99 : f32 to vector<8x128xf32>
    %195 = arith.select %193, %190, %194 : vector<8x128xi1>, vector<8x128xf32>
    %196 = arith.mulf %195, %195 : vector<8x128xf32>
    %cst_100 = arith.constant dense<0.000000e+00> : vector<8xf32>
    %197 = vector.multi_reduction <add>, %196, %cst_100 [1] : vector<8x128xf32> to vector<8xf32>
    %198 = vector.shape_cast %197 : vector<8xf32> to vector<8x1xf32>
    %cst_101 = arith.constant 3.125000e-02 : f32
    %199 = vector.broadcast %cst_101 : f32 to vector<8x1xf32>
    %200 = arith.mulf %198, %199 : vector<8x1xf32>
    %cst_102 = arith.constant 9.99999974E-6 : f32
    %201 = vector.broadcast %cst_102 : f32 to vector<8x1xf32>
    %202 = arith.addf %200, %201 : vector<8x1xf32>
    %203 = math.rsqrt %202 : vector<8x1xf32>
    %204 = vector.broadcast %203 : vector<8x1xf32> to vector<8x128xf32>
    %205 = arith.mulf %195, %204 : vector<8x128xf32>
    %206 = vector.broadcast %183 : vector<1x128xf32> to vector<8x128xf32>
    %207 = arith.mulf %205, %206 : vector<8x128xf32>
    %208 = vector.broadcast %184 : vector<1x128xf32> to vector<8x128xf32>
    %209 = arith.addf %207, %208 : vector<8x128xf32>
    %c0_103 = arith.constant 0 : index
    %c0_104 = arith.constant 0 : index
    %210 = vector.load %arg20[%c0_103, %c0_104] : memref<1x128xf32, #tpu.memory_space<vmem>>, vector<1x128xf32>
    %211 = vector.broadcast %210 : vector<1x128xf32> to vector<8x128xf32>
    %212 = arith.mulf %209, %211 : vector<8x128xf32>
    %cst_105 = arith.constant dense<0.000000e+00> : vector<8xf32>
    %213 = vector.multi_reduction <add>, %212, %cst_105 [1] : vector<8x128xf32> to vector<8xf32>
    %214 = vector.shape_cast %213 : vector<8xf32> to vector<8x1xf32>
    %c0_106 = arith.constant 0 : index
    %c0_107 = arith.constant 0 : index
    %215 = memref.load %arg21[%c0_106, %c0_107] : memref<1x1xf32, #tpu.memory_space<smem>>
    %216 = vector.broadcast %215 : f32 to vector<8x1xf32>
    %217 = arith.addf %214, %216 : vector<8x1xf32>
    %c0_108 = arith.constant 0 : index
    %c0_109 = arith.constant 0 : index
    %218 = vector.load %arg22[%c0_108, %c0_109] : memref<8x1xf32, #tpu.memory_space<vmem>>, vector<8x1xf32>
    tpu.vector_store %arg22[%c0_108, %c0_109], %217 {strides = array<i32>} : memref<8x1xf32, #tpu.memory_space<vmem>>, vector<8x1xf32>,
    return
  }
  func.func @transform_0(%arg0: i32) -> (i32, i32) {
    %c0_i32 = arith.constant 0 : i32
    %c0_i32_0 = arith.constant 0 : i32
    return %arg0, %c0_i32 : i32, i32
  }
  func.func @transform_1(%arg0: i32) -> (i32, i32, i32) {
    %c0_i32 = arith.constant 0 : i32
    %c0_i32_0 = arith.constant 0 : i32
    %c0_i32_1 = arith.constant 0 : i32
    return %c0_i32, %arg0, %c0_i32_0 : i32, i32, i32
  }
  func.func @transform_2(%arg0: i32) -> (i32, i32) {
    %c0_i32 = arith.constant 0 : i32
    %c0_i32_0 = arith.constant 0 : i32
    return %arg0, %c0_i32 : i32, i32
  }
  func.func @transform_3(%arg0: i32) -> (i32, i32) {
    %c0_i32 = arith.constant 0 : i32
    %c0_i32_0 = arith.constant 0 : i32
    %c0_i32_1 = arith.constant 0 : i32
    return %c0_i32, %c0_i32_0 : i32, i32
  }
  func.func @transform_4(%arg0: i32) -> (i32, i32) {
    %c0_i32 = arith.constant 0 : i32
    %c0_i32_0 = arith.constant 0 : i32
    %c0_i32_1 = arith.constant 0 : i32
    return %c0_i32, %c0_i32_0 : i32, i32
  }
  func.func @transform_5(%arg0: i32) -> (i32, i32) {
    %c0_i32 = arith.constant 0 : i32
    %c0_i32_0 = arith.constant 0 : i32
    %c0_i32_1 = arith.constant 0 : i32
    return %c0_i32, %c0_i32_0 : i32, i32
  }
  func.func @transform_6(%arg0: i32) -> (i32, i32) {
    %c0_i32 = arith.constant 0 : i32
    %c0_i32_0 = arith.constant 0 : i32
    %c0_i32_1 = arith.constant 0 : i32
    return %c0_i32, %c0_i32_0 : i32, i32
  }
  func.func @transform_7(%arg0: i32) -> (i32, i32) {
    %c0_i32 = arith.constant 0 : i32
    %c0_i32_0 = arith.constant 0 : i32
    %c0_i32_1 = arith.constant 0 : i32
    return %c0_i32, %c0_i32_0 : i32, i32
  }
  func.func @transform_8(%arg0: i32) -> (i32, i32) {
    %c0_i32 = arith.constant 0 : i32
    %c0_i32_0 = arith.constant 0 : i32
    %c0_i32_1 = arith.constant 0 : i32
    return %c0_i32, %c0_i32_0 : i32, i32
  }
  func.func @transform_9(%arg0: i32) -> (i32, i32) {
    %c0_i32 = arith.constant 0 : i32
    %c0_i32_0 = arith.constant 0 : i32
    %c0_i32_1 = arith.constant 0 : i32
    return %c0_i32, %c0_i32_0 : i32, i32
  }
  func.func @transform_10(%arg0: i32) -> (i32, i32) {
    %c0_i32 = arith.constant 0 : i32
    %c0_i32_0 = arith.constant 0 : i32
    %c0_i32_1 = arith.constant 0 : i32
    return %c0_i32, %c0_i32_0 : i32, i32
  }
  func.func @transform_11(%arg0: i32) -> (i32, i32) {
    %c0_i32 = arith.constant 0 : i32
    %c0_i32_0 = arith.constant 0 : i32
    %c0_i32_1 = arith.constant 0 : i32
    return %c0_i32, %c0_i32_0 : i32, i32
  }
  func.func @transform_12(%arg0: i32) -> (i32, i32) {
    %c0_i32 = arith.constant 0 : i32
    %c0_i32_0 = arith.constant 0 : i32
    %c0_i32_1 = arith.constant 0 : i32
    return %c0_i32, %c0_i32_0 : i32, i32
  }
  func.func @transform_13(%arg0: i32) -> (i32, i32, i32) {
    %c0_i32 = arith.constant 0 : i32
    %c0_i32_0 = arith.constant 0 : i32
    %c0_i32_1 = arith.constant 0 : i32
    %c0_i32_2 = arith.constant 0 : i32
    return %c0_i32, %c0_i32_0, %c0_i32_1 : i32, i32, i32
  }
  func.func @transform_14(%arg0: i32) -> (i32, i32, i32) {
    %c0_i32 = arith.constant 0 : i32
    %c0_i32_0 = arith.constant 0 : i32
    %c0_i32_1 = arith.constant 0 : i32
    %c0_i32_2 = arith.constant 0 : i32
    return %c0_i32, %c0_i32_0, %c0_i32_1 : i32, i32, i32
  }
  func.func @transform_15(%arg0: i32) -> (i32, i32, i32) {
    %c0_i32 = arith.constant 0 : i32
    %c0_i32_0 = arith.constant 0 : i32
    %c0_i32_1 = arith.constant 0 : i32
    %c0_i32_2 = arith.constant 0 : i32
    return %c0_i32, %c0_i32_0, %c0_i32_1 : i32, i32, i32
  }
  func.func @transform_16(%arg0: i32) -> (i32, i32, i32) {
    %c0_i32 = arith.constant 0 : i32
    %c0_i32_0 = arith.constant 0 : i32
    %c0_i32_1 = arith.constant 0 : i32
    %c0_i32_2 = arith.constant 0 : i32
    return %c0_i32, %c0_i32_0, %c0_i32_1 : i32, i32, i32
  }
  func.func @transform_17(%arg0: i32) -> (i32, i32) {
    %c0_i32 = arith.constant 0 : i32
    %c0_i32_0 = arith.constant 0 : i32
    %c0_i32_1 = arith.constant 0 : i32
    return %c0_i32, %c0_i32_0 : i32, i32
  }
  func.func @transform_18(%arg0: i32) -> (i32, i32) {
    %c0_i32 = arith.constant 0 : i32
    %c0_i32_0 = arith.constant 0 : i32
    %c0_i32_1 = arith.constant 0 : i32
    return %c0_i32, %c0_i32_0 : i32, i32
  }
  func.func @transform_19(%arg0: i32) -> (i32, i32) {
    %c0_i32 = arith.constant 0 : i32
    %c0_i32_0 = arith.constant 0 : i32
    %c0_i32_1 = arith.constant 0 : i32
    return %c0_i32, %c0_i32_0 : i32, i32
  }
  func.func @transform_20(%arg0: i32) -> (i32, i32) {
    %c0_i32 = arith.constant 0 : i32
    %c0_i32_0 = arith.constant 0 : i32
    %c0_i32_1 = arith.constant 0 : i32
    return %c0_i32, %c0_i32_0 : i32, i32
  }
  func.func @transform_21(%arg0: i32) -> (i32, i32) {
    %c0_i32 = arith.constant 0 : i32
    %c0_i32_0 = arith.constant 0 : i32
    return %arg0, %c0_i32 : i32, i32
  }
  func.func @transform_22(%arg0: i32) -> (i32, i32, i32) {
    %c0_i32 = arith.constant 0 : i32
    %c0_i32_0 = arith.constant 0 : i32
    %c0_i32_1 = arith.constant 0 : i32
    return %c0_i32, %arg0, %c0_i32_0 : i32, i32, i32
  }
}

</mosaic_0001>

<llo_original>
// kernel: r_critic_forward.1
$region0: #{r_critic_forward.1}
  #allocation0 [shape = 'u32[]', space=smem, size = 0x4, offset = 0x4, fixed_abs, tag = 'smem constant byte address 0x4 - core index']
  #allocation1 [shape = 'u32[144,128]{1,0:T(1,128)}', space=vmem, size = 0x12000, scoped, tag = 'internal scratch']
  #allocation2 [shape = 'f32[1,1]{1,0:T(1,128)S(6)}', space=smem, size = 0x200, scoped, tag = 'scoped memory for r_critic_forward.1']
  %s0 = inlined_call_operand.vmem [shape: f32[8,128], index: 0, kind: input, shape index: {}]
  %s1 = inlined_call_operand.vmem [shape: f32[2,8,128], index: 1, kind: input, shape index: {}, may-alias: {1,22}]
  %s2 = inlined_call_operand.vmem [shape: f32[8,1], index: 2, kind: input, shape index: {}]
  %s3 = inlined_call_operand.vmem [shape: f32[1,128], index: 3, kind: input, shape index: {}]
  %s4 = inlined_call_operand.vmem [shape: f32[1,128], index: 4, kind: input, shape index: {}]
  %s5 = inlined_call_operand.hbm [shape: f32[128,128], index: 5, kind: input, shape index: {}]
  %s6 = inlined_call_operand.vmem [shape: f32[1,128], index: 6, kind: input, shape index: {}]
  %s7 = inlined_call_operand.vmem [shape: f32[1,128], index: 7, kind: input, shape index: {}]
  %s8 = inlined_call_operand.vmem [shape: f32[1,128], index: 8, kind: input, shape index: {}]
  %s9 = inlined_call_operand.hbm [shape: f32[128,128], index: 9, kind: input, shape index: {}]
  %s10 = inlined_call_operand.vmem [shape: f32[1,128], index: 10, kind: input, shape index: {}]
  %s11 = inlined_call_operand.vmem [shape: f32[1,128], index: 11, kind: input, shape index: {}]
  %s12 = inlined_call_operand.vmem [shape: f32[1,128], index: 12, kind: input, shape index: {}]
  %s13 = inlined_call_operand.hbm [shape: f32[2,128,384], index: 13, kind: input, shape index: {}]
  %s14 = inlined_call_operand.hbm [shape: f32[2,128,384], index: 14, kind: input, shape index: {}]
  %s15 = inlined_call_operand.vmem [shape: f32[2,1,384], index: 15, kind: input, shape index: {}]
  %s16 = inlined_call_operand.vmem [shape: f32[2,1,384], index: 16, kind: input, shape index: {}]
  %s17 = inlined_call_operand.vmem [shape: f32[1,128], index: 17, kind: input, shape index: {}]
  %s18 = inlined_call_operand.vmem [shape: f32[1,128], index: 18, kind: input, shape index: {}]
  %s19 = inlined_call_operand.vmem [shape: f32[1,128], index: 19, kind: input, shape index: {}]
  %s20 = inlined_call_operand.<no memory space> [shape: f32[1,1], index: 20, kind: input, shape index: {}]
  %s21 = inlined_call_operand.vmem [shape: f32[8,1], index: 21, kind: output, shape index: {0}]
  %s22 = inlined_call_operand.vmem [shape: f32[2,8,128], index: 22, kind: output, shape index: {1}, may-alias: {1,22}]
  %23 = xla_tuple %s21, %s22
  %s24 = sld [smem:[#allocation0]]
  $region118: #{r_critic_forward.1} parent=0
    _
  %s26 = ssub.s32 1, %s24
  %s27 = scalar_select 0, %s26, %s24
  %28 = sst [smem:[#allocation2]] %s20
  $region1: #{r_critic_forward.1} parent=0
    #allocation3 [shape = 'u8[65536]{0}', space=vmem, size = 0x10000, scoped, tag = 'input window, operand 5, single buffered']
    #allocation4 [shape = 's32[1]{0}', space=sflag, size = 0x4, scoped, tag = 'scoped memory for r_critic_forward.1']
    #allocation5 [shape = 'u8[65536]{0}', space=vmem, size = 0x10000, scoped, tag = 'input window, operand 9, single buffered']
    #allocation6 [shape = 's32[1]{0}', space=sflag, size = 0x4, scoped, tag = 'scoped memory for r_critic_forward.1']
    #allocation7 [shape = 'u8[393216]{0}', space=vmem, size = 0x60000, scoped, tag = 'input window, operand 13, single buffered']
    #allocation8 [shape = 'u8[393216]{0}', space=vmem, size = 0x60000, scoped, tag = 'input window, operand 14, single buffered']
    #allocation9 [shape = 's32[1]{0}', space=sflag, size = 0x4, scoped, tag = 'scoped memory for r_critic_forward.1']
    %29 = vsyncpa [#allocation4], 0
    %30 = vsyncpa [#allocation6], 0
    %31 = vsyncpa [#allocation9], 0
    // Predicated region
    $region2: #{r_critic_forward.1} parent=1 // pred_check
      _
    $region3: #{r_critic_forward.1} parent=1 // pred_check_branch
      %33 = sbr.rel (0) target = $region5
    $region4: #{r_critic_forward.1} parent=1 // pred_region
      _
    $region5: #{r_critic_forward.1} parent=1 // pred_fallthru
      _
    // Predicated region
    $region6: #{r_critic_forward.1} parent=1 // pred_check
      _
    $region7: #{r_critic_forward.1} parent=1 // pred_check_branch
      %35 = sbr.rel (0) target = $region9
    $region8: #{r_critic_forward.1} parent=1 // pred_region
      _
    $region9: #{r_critic_forward.1} parent=1 // pred_fallthru
      _
    // Predicated region
    $region10: #{r_critic_forward.1} parent=1 // pred_check
      _
    $region11: #{r_critic_forward.1} parent=1 // pred_check_branch
      %37 = sbr.rel (0) target = $region13
    $region12: #{r_critic_forward.1} parent=1 // pred_region
      _
    $region13: #{r_critic_forward.1} parent=1 // pred_fallthru
      _
    // Predicated region
    $region14: #{r_critic_forward.1} parent=1 // pred_check
      _
    $region15: #{r_critic_forward.1} parent=1 // pred_check_branch
      %39 = sbr.rel (0) target = $region17
    $region16: #{r_critic_forward.1} parent=1 // pred_region
      _
    $region17: #{r_critic_forward.1} parent=1 // pred_fallthru
      _
    // Predicated region
    $region18: #{r_critic_forward.1} parent=1 // pred_check
      _
    $region19: #{r_critic_forward.1} parent=1 // pred_check_branch
      %41 = sbr.rel (0) target = $region21
    $region20: #{r_critic_forward.1} parent=1 // pred_region
      _
    $region21: #{r_critic_forward.1} parent=1 // pred_fallthru
      _
    // Predicated region
    $region22: #{r_critic_forward.1} parent=1 // pred_check
      _
    $region23: #{r_critic_forward.1} parent=1 // pred_check_branch
      %43 = sbr.rel (0) target = $region25
    $region24: #{r_critic_forward.1} parent=1 // pred_region
      %s45 = ssub.s32 2048, 2048
      %46 = vsyncadd [#allocation4], %s45
      %s47 = sshll.u32 [#allocation3], 4
      %s48 = int_to_ptr.vmem [resolvable:$true] %s47
      %53 = dma.hbm_to_vmem [thread:$0]  %s5, 2048, %s48, [#allocation4], 128, 128, 8
    $region25: #{r_critic_forward.1} parent=1 // pred_fallthru
      _
    // Predicated region
    $region26: #{r_critic_forward.1} parent=1 // pred_check
      _
    $region27: #{r_critic_forward.1} parent=1 // pred_check_branch
      %55 = sbr.rel (0) target = $region29
    $region28: #{r_critic_forward.1} parent=1 // pred_region
      _
    $region29: #{r_critic_forward.1} parent=1 // pred_fallthru
      _
    // Predicated region
    $region30: #{r_critic_forward.1} parent=1 // pred_check
      _
    $region31: #{r_critic_forward.1} parent=1 // pred_check_branch
      %57 = sbr.rel (0) target = $region33
    $region32: #{r_critic_forward.1} parent=1 // pred_region
      _
    $region33: #{r_critic_forward.1} parent=1 // pred_fallthru
      _
    // Predicated region
    $region34: #{r_critic_forward.1} parent=1 // pred_check
      _
    $region35: #{r_critic_forward.1} parent=1 // pred_check_branch
      %59 = sbr.rel (0) target = $region37
    $region36: #{r_critic_forward.1} parent=1 // pred_region
      _
    $region37: #{r_critic_forward.1} parent=1 // pred_fallthru
      _
    // Predicated region
    $region38: #{r_critic_forward.1} parent=1 // pred_check
      _
    $region39: #{r_critic_forward.1} parent=1 // pred_check_branch
      %61 = sbr.rel (0) target = $region41
    $region40: #{r_critic_forward.1} parent=1 // pred_region
      %s63 = ssub.s32 2048, 2048
      %64 = vsyncadd [#allocation6], %s63
      %s65 = sshll.u32 [#allocation5], 4
      %s66 = int_to_ptr.vmem [resolvable:$true] %s65
      %71 = dma.hbm_to_vmem [thread:$0]  %s9, 2048, %s66, [#allocation6], 128, 128, 8
    $region41: #{r_critic_forward.1} parent=1 // pred_fallthru
      _
    // Predicated region
    $region42: #{r_critic_forward.1} parent=1 // pred_check
      _
    $region43: #{r_critic_forward.1} parent=1 // pred_check_branch
      %73 = sbr.rel (0) target = $region45
    $region44: #{r_critic_forward.1} parent=1 // pred_region
      _
    $region45: #{r_critic_forward.1} parent=1 // pred_fallthru
      _
    // Predicated region
    $region46: #{r_critic_forward.1} parent=1 // pred_check
      _
    $region47: #{r_critic_forward.1} parent=1 // pred_check_branch
      %75 = sbr.rel (0) target = $region49
    $region48: #{r_critic_forward.1} parent=1 // pred_region
      _
    $region49: #{r_critic_forward.1} parent=1 // pred_fallthru
      _
    // Predicated region
    $region50: #{r_critic_forward.1} parent=1 // pred_check
      _
    $region51: #{r_critic_forward.1} parent=1 // pred_check_branch
      %77 = sbr.rel (0) target = $region53
    $region52: #{r_critic_forward.1} parent=1 // pred_region
      _
    $region53: #{r_critic_forward.1} parent=1 // pred_fallthru
      _
    // Predicated region
    $region54: #{r_critic_forward.1} parent=1 // pred_check
      _
    $region55: #{r_critic_forward.1} parent=1 // pred_check_branch
      %79 = sbr.rel (0) target = $region57
    $region56: #{r_critic_forward.1} parent=1 // pred_region
      %s81 = ssub.s32 12288, 12288
      %82 = vsyncadd [#allocation6], %s81
      %s83 = sshll.u32 [#allocation7], 4
      %s84 = int_to_ptr.vmem [resolvable:$true] %s83
      %89 = dma.hbm_to_vmem [thread:$0]  %s13, 12288, %s84, [#allocation6], 384, 384, 24
    $region57: #{r_critic_forward.1} parent=1 // pred_fallthru
      _
    // Predicated region
    $region58: #{r_critic_forward.1} parent=1 // pred_check
      _
    $region59: #{r_critic_forward.1} parent=1 // pred_check_branch
      %91 = sbr.rel (0) target = $region61
    $region60: #{r_critic_forward.1} parent=1 // pred_region
      %s93 = ssub.s32 12288, 12288
      %94 = vsyncadd [#allocation9], %s93
      %s95 = sshll.u32 [#allocation8], 4
      %s96 = int_to_ptr.vmem [resolvable:$true] %s95
      %101 = dma.hbm_to_vmem [thread:$0]  %s14, 12288, %s96, [#allocation9], 384, 384, 24
    $region61: #{r_critic_forward.1} parent=1 // pred_fallthru
      _
    // Predicated region
    $region62: #{r_critic_forward.1} parent=1 // pred_check
      _
    $region63: #{r_critic_forward.1} parent=1 // pred_check_branch
      %103 = sbr.rel (0) target = $region65
    $region64: #{r_critic_forward.1} parent=1 // pred_region
      _
    $region65: #{r_critic_forward.1} parent=1 // pred_fallthru
      _
    // Predicated region
    $region66: #{r_critic_forward.1} parent=1 // pred_check
      _
    $region67: #{r_critic_forward.1} parent=1 // pred_check_branch
      %105 = sbr.rel (0) target = $region69
    $region68: #{r_critic_forward.1} parent=1 // pred_region
      _
    $region69: #{r_critic_forward.1} parent=1 // pred_fallthru
      _
    // Predicated region
    $region70: #{r_critic_forward.1} parent=1 // pred_check
      _
    $region71: #{r_critic_forward.1} parent=1 // pred_check_branch
      %107 = sbr.rel (0) target = $region73
    $region72: #{r_critic_forward.1} parent=1 // pred_region
      _
    $region73: #{r_critic_forward.1} parent=1 // pred_fallthru
      _
    // Predicated region
    $region74: #{r_critic_forward.1} parent=1 // pred_check
      _
    $region75: #{r_critic_forward.1} parent=1 // pred_check_branch
      %109 = sbr.rel (0) target = $region77
    $region76: #{r_critic_forward.1} parent=1 // pred_region
      _
    $region77: #{r_critic_forward.1} parent=1 // pred_fallthru
      _
    // Predicated region
    $region78: #{r_critic_forward.1} parent=1 // pred_check
      _
    $region79: #{r_critic_forward.1} parent=1 // pred_check_branch
      %111 = sbr.rel (0) target = $region81
    $region80: #{r_critic_forward.1} parent=1 // pred_region
      _
    $region81: #{r_critic_forward.1} parent=1 // pred_fallthru
      _
    // Predicated region
    $region82: #{r_critic_forward.1} parent=1 // pred_check
      _
    $region83: #{r_critic_forward.1} parent=1 // pred_check_branch
      %113 = sbr.rel (0) target = $region85
    $region84: #{r_critic_forward.1} parent=1 // pred_region
      _
    $region85: #{r_critic_forward.1} parent=1 // pred_fallthru
      _
    // Predicated region
    $region86: #{r_critic_forward.1} parent=1 // pred_check
      _
    $region87: #{r_critic_forward.1} parent=1 // pred_check_branch
      %115 = sbr.rel (0) target = $region89
    $region88: #{r_critic_forward.1} parent=1 // pred_region
      %116 = dma.done [#allocation4], 2048
    $region89: #{r_critic_forward.1} parent=1 // pred_fallthru
      _
    // Predicated region
    $region90: #{r_critic_forward.1} parent=1 // pred_check
      _
    $region91: #{r_critic_forward.1} parent=1 // pred_check_branch
      %118 = sbr.rel (0) target = $region93
    $region92: #{r_critic_forward.1} parent=1 // pred_region
      %119 = dma.done [#allocation6], 2048
    $region93: #{r_critic_forward.1} parent=1 // pred_fallthru
      _
    // Predicated region
    $region94: #{r_critic_forward.1} parent=1 // pred_check
      _
    $region95: #{r_critic_forward.1} parent=1 // pred_check_branch
      %121 = sbr.rel (0) target = $region97
    $region96: #{r_critic_forward.1} parent=1 // pred_region
      %122 = dma.done [#allocation6], 12288
    $region97: #{r_critic_forward.1} parent=1 // pred_fallthru
      _
    // Predicated region
    $region98: #{r_critic_forward.1} parent=1 // pred_check
      _
    $region99: #{r_critic_forward.1} parent=1 // pred_check_branch
      %124 = sbr.rel (0) target = $region101
    $region100: #{r_critic_forward.1} parent=1 // pred_region
      %125 = dma.done [#allocation9], 12288
    $region101: #{r_critic_forward.1} parent=1 // pred_fallthru
      _
    %v126 = vld [vmem:[%s0] sm:$0xff]
    %v127 = vld [vmem:[%s3] sm:$0x1]
    %v128 = vld [vmem:[%s4] sm:$0x1]
    %129 = vadd.xlane.f32.xlu0 %v126
    %v130 = vpop.xlane.xlu0 %129
    %v131 = vmul.f32 %v130, 0.041666668
    %v132 = vsub.f32 %v126, %v131
    %v133 = vlaneseq
    %v134 = vand.u32 %v133, 127
    %vm135 = vcmp.lt.s32.totalorder %v134, 24
    %v136 = vsel %vm135, %v132, 0.0
    %v137 = vmul.f32 %v136, %v136
    %138 = vadd.xlane.f32.xlu0 %v137
    %v139 = vpop.xlane.xlu0 %138
    %v140 = vmul.f32 %v139, 0.041666668
    %v141 = vadd.f32 %v140, 1e-05
    %v142 = vrsqrt.pop %v141
    %v143 = vmul.f32 %v136, %v142
    %v145 = vlaneseq
    %v146 = vshrl.u32 %v145, 7
    %v147 = vsub.s32 0, %v146
    %v148 = vrot.slane %v127, %v147
    %v150 = vmul.f32 %v143, %v148
    %v152 = vlaneseq
    %v153 = vshrl.u32 %v152, 7
    %v154 = vsub.s32 0, %v153
    %v155 = vrot.slane %v128, %v154
    %v157 = vadd.f32 %v150, %v155
    %v158 = vld [vmem:[#allocation3] sm:$0xff]
    %v159 = vld [vmem:[#allocation3 + $0x8] sm:$0xff]
    %v160 = vld [vmem:[#allocation3 + $0x10] sm:$0xff]
    %v161 = vld [vmem:[#allocation3 + $0x18] sm:$0xff]
    %v162 = vld [vmem:[#allocation3 + $0x20] sm:$0xff]
    %v163 = vld [vmem:[#allocation3 + $0x28] sm:$0xff]
    %v164 = vld [vmem:[#allocation3 + $0x30] sm:$0xff]
    %v165 = vld [vmem:[#allocation3 + $0x38] sm:$0xff]
    %v166 = vld [vmem:[#allocation3 + $0x40] sm:$0xff]
    %v167 = vld [vmem:[#allocation3 + $0x48] sm:$0xff]
    %v168 = vld [vmem:[#allocation3 + $0x50] sm:$0xff]
    %v169 = vld [vmem:[#allocation3 + $0x58] sm:$0xff]
    %v170 = vld [vmem:[#allocation3 + $0x60] sm:$0xff]
    %v171 = vld [vmem:[#allocation3 + $0x68] sm:$0xff]
    %v172 = vld [vmem:[#allocation3 + $0x70] sm:$0xff]
    %v173 = vld [vmem:[#allocation3 + $0x78] sm:$0xff]
    %v174 = vld [vmem:[%s6] sm:$0x1]
    %v176 = vlaneseq
    %v177 = vshrl.u32 %v176, 7
    %v178 = vsub.s32 0, %v177
    %v179 = vrot.slane %v174, %v178
    %181 = vmatprep.subr.mxu0 0.0
    %182 = vmatpush1.msra.mxu0 %v173
    %183 = vmatprep.subr.mxu0 0.0
    %184 = vmatpush1.msra.mxu0 %v172
    %185 = vmatprep.subr.mxu0 0.0
    %186 = vmatpush1.msra.mxu0 %v171
    %187 = vmatprep.subr.mxu0 0.0
    %188 = vmatpush1.msra.mxu0 %v170
    %189 = vmatprep.subr.mxu0 0.0
    %190 = vmatpush1.msra.mxu0 %v169
    %191 = vmatprep.subr.mxu0 0.0
    %192 = vmatpush1.msra.mxu0 %v168
    %193 = vmatprep.subr.mxu0 0.0
    %194 = vmatpush1.msra.mxu0 %v167
    %195 = vmatprep.subr.mxu0 0.0
    %196 = vmatpush1.msra.mxu0 %v166
    %197 = vmatprep.subr.mxu0 0.0
    %198 = vmatpush1.msra.mxu0 %v165
    %199 = vmatprep.subr.mxu0 0.0
    %200 = vmatpush1.msra.mxu0 %v164
    %201 = vmatprep.subr.mxu0 0.0
    %202 = vmatpush1.msra.mxu0 %v163
    %203 = vmatprep.subr.mxu0 0.0
    %204 = vmatpush1.msra.mxu0 %v162
    %205 = vmatprep.subr.mxu0 0.0
    %206 = vmatpush1.msra.mxu0 %v161
    %207 = vmatprep.subr.mxu0 0.0
    %208 = vmatpush1.msra.mxu0 %v160
    %209 = vmatprep.subr.mxu0 0.0
    %210 = vmatpush1.msra.mxu0 %v159
    %211 = vmatprep.subr.mxu0 0.0
    %212 = vmatpush1.msra.mxu0 %v158
    %213 = vmatprep.subr.mxu0 0.0
    %214 = vmatpush2.msra.mxu0 0.0
    %215 = vmatprep.subr.mxu0 0.0
    %216 = vmatpush2.msra.mxu0 0.0
    %217 = vmatprep.subr.mxu0 0.0
    %218 = vmatpush2.msra.mxu0 0.0
    %219 = vmatprep.subr.mxu0 0.0
    %220 = vmatpush2.msra.mxu0 0.0
    %221 = vmatprep.subr.mxu0 0.0
    %222 = vmatpush2.msra.mxu0 0.0
    %223 = vmatprep.subr.mxu0 0.0
    %224 = vmatpush2.msra.mxu0 0.0
    %225 = vmatprep.subr.mxu0 0.0
    %226 = vmatpush2.msra.mxu0 0.0
    %227 = vmatprep.subr.mxu0 0.0
    %228 = vmatpush2.msra.mxu0 0.0
    %229 = vmatprep.subr.mxu0 0.0
    %230 = vmatpush2.msra.mxu0 0.0
    %231 = vmatprep.subr.mxu0 0.0
    %232 = vmatpush2.msra.mxu0 0.0
    %233 = vmatprep.subr.mxu0 0.0
    %234 = vmatpush2.msra.mxu0 0.0
    %235 = vmatprep.subr.mxu0 0.0
    %236 = vmatpush2.msra.mxu0 0.0
    %237 = vmatprep.subr.mxu0 0.0
    %238 = vmatpush2.msra.mxu0 0.0
    %239 = vmatprep.subr.mxu0 0.0
    %240 = vmatpush2.msra.mxu0 0.0
    %241 = vmatprep.subr.mxu0 0.0
    %242 = vmatpush2.msra.mxu0 0.0
    %243 = vmatprep.subr.mxu0 0.0
    %244 = vmatpush2.msra.mxu0 0.0
    %245 = vmatprep.mubr.f32.mxu0 0.0
    %246 = vmatmul.mubr.f32.gmra.mxu0 %v157
    %v247 = vpop.f32.mrf.mxu0
    %v248 = vadd.f32 %v179, %v247
    %v249 = vpop.f32.mrf.mxu0
    %250 = vdwg.mxu0
    %v251 = vmax.f32 %v248, 0.0
    %v252 = vld [vmem:[%s7] sm:$0x1]
    %v253 = vld [vmem:[%s8] sm:$0x1]
    %254 = vadd.xlane.f32.xlu0 %v251
    %v255 = vpop.xlane.xlu0 %254
    %v256 = vmul.f32 %v255, 0.03125
    %v257 = vsub.f32 %v251, %v256
    %vm258 = vcmp.lt.s32.totalorder %v134, 32
    %v259 = vsel %vm258, %v257, 0.0
    %v260 = vmul.f32 %v259, %v259
    %261 = vadd.xlane.f32.xlu0 %v260
    %v262 = vpop.xlane.xlu0 %261
    %v263 = vmul.f32 %v262, 0.03125
    %v264 = vadd.f32 %v263, 1e-05
    %v265 = vrsqrt.pop %v264
    %v266 = vmul.f32 %v259, %v265
    %v268 = vlaneseq
    %v269 = vshrl.u32 %v268, 7
    %v270 = vsub.s32 0, %v269
    %v271 = vrot.slane %v252, %v270
    %v273 = vmul.f32 %v266, %v271
    %v275 = vlaneseq
    %v276 = vshrl.u32 %v275, 7
    %v277 = vsub.s32 0, %v276
    %v278 = vrot.slane %v253, %v277
    %v280 = vadd.f32 %v273, %v278
    %v281 = vld [vmem:[#allocation5] sm:$0xff]
    %v282 = vld [vmem:[#allocation5 + $0x8] sm:$0xff]
    %v283 = vld [vmem:[#allocation5 + $0x10] sm:$0xff]
    %v284 = vld [vmem:[#allocation5 + $0x18] sm:$0xff]
    %v285 = vld [vmem:[#allocation5 + $0x20] sm:$0xff]
    %v286 = vld [vmem:[#allocation5 + $0x28] sm:$0xff]
    %v287 = vld [vmem:[#allocation5 + $0x30] sm:$0xff]
    %v288 = vld [vmem:[#allocation5 + $0x38] sm:$0xff]
    %v289 = vld [vmem:[#allocation5 + $0x40] sm:$0xff]
    %v290 = vld [vmem:[#allocation5 + $0x48] sm:$0xff]
    %v291 = vld [vmem:[#allocation5 + $0x50] sm:$0xff]
    %v292 = vld [vmem:[#allocation5 + $0x58] sm:$0xff]
    %v293 = vld [vmem:[#allocation5 + $0x60] sm:$0xff]
    %v294 = vld [vmem:[#allocation5 + $0x68] sm:$0xff]
    %v295 = vld [vmem:[#allocation5 + $0x70] sm:$0xff]
    %v296 = vld [vmem:[#allocation5 + $0x78] sm:$0xff]
    %v297 = vld [vmem:[%s10] sm:$0x1]
    %v299 = vlaneseq
    %v300 = vshrl.u32 %v299, 7
    %v301 = vsub.s32 0, %v300
    %v302 = vrot.slane %v297, %v301
    %304 = vmatprep.subr.mxu0 0.0
    %305 = vmatpush1.msra.mxu0 %v296
    %306 = vmatprep.subr.mxu0 0.0
    %307 = vmatpush1.msra.mxu0 %v295
    %308 = vmatprep.subr.mxu0 0.0
    %309 = vmatpush1.msra.mxu0 %v294
    %310 = vmatprep.subr.mxu0 0.0
    %311 = vmatpush1.msra.mxu0 %v293
    %312 = vmatprep.subr.mxu0 0.0
    %313 = vmatpush1.msra.mxu0 %v292
    %314 = vmatprep.subr.mxu0 0.0
    %315 = vmatpush1.msra.mxu0 %v291
    %316 = vmatprep.subr.mxu0 0.0
    %317 = vmatpush1.msra.mxu0 %v290
    %318 = vmatprep.subr.mxu0 0.0
    %319 = vmatpush1.msra.mxu0 %v289
    %320 = vmatprep.subr.mxu0 0.0
    %321 = vmatpush1.msra.mxu0 %v288
    %322 = vmatprep.subr.mxu0 0.0
    %323 = vmatpush1.msra.mxu0 %v287
    %324 = vmatprep.subr.mxu0 0.0
    %325 = vmatpush1.msra.mxu0 %v286
    %326 = vmatprep.subr.mxu0 0.0
    %327 = vmatpush1.msra.mxu0 %v285
    %328 = vmatprep.subr.mxu0 0.0
    %329 = vmatpush1.msra.mxu0 %v284
    %330 = vmatprep.subr.mxu0 0.0
    %331 = vmatpush1.msra.mxu0 %v283
    %332 = vmatprep.subr.mxu0 0.0
    %333 = vmatpush1.msra.mxu0 %v282
    %334 = vmatprep.subr.mxu0 0.0
    %335 = vmatpush1.msra.mxu0 %v281
    %336 = vmatprep.subr.mxu0 0.0
    %337 = vmatpush2.msra.mxu0 0.0
    %338 = vmatprep.subr.mxu0 0.0
    %339 = vmatpush2.msra.mxu0 0.0
    %340 = vmatprep.subr.mxu0 0.0
    %341 = vmatpush2.msra.mxu0 0.0
    %342 = vmatprep.subr.mxu0 0.0
    %343 = vmatpush2.msra.mxu0 0.0
    %344 = vmatprep.subr.mxu0 0.0
    %345 = vmatpush2.msra.mxu0 0.0
    %346 = vmatprep.subr.mxu0 0.0
    %347 = vmatpush2.msra.mxu0 0.0
    %348 = vmatprep.subr.mxu0 0.0
    %349 = vmatpush2.msra.mxu0 0.0
    %350 = vmatprep.subr.mxu0 0.0
    %351 = vmatpush2.msra.mxu0 0.0
    %352 = vmatprep.subr.mxu0 0.0
    %353 = vmatpush2.msra.mxu0 0.0
    %354 = vmatprep.subr.mxu0 0.0
    %355 = vmatpush2.msra.mxu0 0.0
    %356 = vmatprep.subr.mxu0 0.0
    %357 = vmatpush2.msra.mxu0 0.0
    %358 = vmatprep.subr.mxu0 0.0
    %359 = vmatpush2.msra.mxu0 0.0
    %360 = vmatprep.subr.mxu0 0.0
    %361 = vmatpush2.msra.mxu0 0.0
    %362 = vmatprep.subr.mxu0 0.0
    %363 = vmatpush2.msra.mxu0 0.0
    %364 = vmatprep.subr.mxu0 0.0
    %365 = vmatpush2.msra.mxu0 0.0
    %366 = vmatprep.subr.mxu0 0.0
    %367 = vmatpush2.msra.mxu0 0.0
    %368 = vmatprep.mubr.f32.mxu0 0.0
    %369 = vmatmul.mubr.f32.gmra.mxu0 %v280
    %v370 = vpop.f32.mrf.mxu0
    %v371 = vadd.f32 %v302, %v370
    %v372 = vpop.f32.mrf.mxu0
    %373 = vdwg.mxu0
    %v374 = vmax.f32 %v371, 0.0
    %v375 = vld [vmem:[%s11] sm:$0x1]
    %v376 = vld [vmem:[%s12] sm:$0x1]
    %377 = vadd.xlane.f32.xlu0 %v374
    %v378 = vpop.xlane.xlu0 %377
    %v379 = vmul.f32 %v378, 0.03125
    %v380 = vsub.f32 %v374, %v379
    %v381 = vsel %vm258, %v380, 0.0
    %v382 = vmul.f32 %v381, %v381
    %383 = vadd.xlane.f32.xlu0 %v382
    %v384 = vpop.xlane.xlu0 %383
    %v385 = vmul.f32 %v384, 0.03125
    %v386 = vadd.f32 %v385, 1e-05
    %v387 = vrsqrt.pop %v386
    %v388 = vmul.f32 %v381, %v387
    %v390 = vlaneseq
    %v391 = vshrl.u32 %v390, 7
    %v392 = vsub.s32 0, %v391
    %v393 = vrot.slane %v375, %v392
    %v395 = vmul.f32 %v388, %v393
    %v397 = vlaneseq
    %v398 = vshrl.u32 %v397, 7
    %v399 = vsub.s32 0, %v398
    %v400 = vrot.slane %v376, %v399
    %v402 = vadd.f32 %v395, %v400
    %v403 = vld [vmem:[%s2] sm:$0xff]
    %405 = vset.pattern.permute.xlu0 0
    %406 = vperm.xlu0 %405, %v403
    %v407 = vpop.permute.xlu0 %406
    %v409 = vld [vmem:[%s1] sm:$0xff]
    %v410 = vmul.f32 %v409, %v407
    %v411 = vld [vmem:[#allocation7] sm:$0xff]
    %v412 = vld [vmem:[#allocation7 + $0x8] sm:$0xff]
    %v413 = vld [vmem:[#allocation7 + $0x10] sm:$0xff]
    %v414 = vld [vmem:[#allocation7 + $0x18] sm:$0xff]
    %v415 = vld [vmem:[#allocation7 + $0x20] sm:$0xff]
    %v416 = vld [vmem:[#allocation7 + $0x28] sm:$0xff]
    %v417 = vld [vmem:[#allocation7 + $0x30] sm:$0xff]
    %v418 = vld [vmem:[#allocation7 + $0x38] sm:$0xff]
    %v419 = vld [vmem:[#allocation7 + $0x40] sm:$0xff]
    %v420 = vld [vmem:[#allocation7 + $0x48] sm:$0xff]
    %v421 = vld [vmem:[#allocation7 + $0x50] sm:$0xff]
    %v422 = vld [vmem:[#allocation7 + $0x58] sm:$0xff]
    %v423 = vld [vmem:[#allocation7 + $0x60] sm:$0xff]
    %v424 = vld [vmem:[#allocation7 + $0x68] sm:$0xff]
    %v425 = vld [vmem:[#allocation7 + $0x70] sm:$0xff]
    %v426 = vld [vmem:[#allocation7 + $0x78] sm:$0xff]
    %v427 = vld [vmem:[#allocation7 + $0x80] sm:$0xff]
    %v428 = vld [vmem:[#allocation7 + $0x88] sm:$0xff]
    %v429 = vld [vmem:[#allocation7 + $0x90] sm:$0xff]
    %v430 = vld [vmem:[#allocation7 + $0x98] sm:$0xff]
    %v431 = vld [vmem:[#allocation7 + $0xa0] sm:$0xff]
    %v432 = vld [vmem:[#allocation7 + $0xa8] sm:$0xff]
    %v433 = vld [vmem:[#allocation7 + $0xb0] sm:$0xff]
    %v434 = vld [vmem:[#allocation7 + $0xb8] sm:$0xff]
    %v435 = vld [vmem:[#allocation7 + $0xc0] sm:$0xff]
    %v436 = vld [vmem:[#allocation7 + $0xc8] sm:$0xff]
    %v437 = vld [vmem:[#allocation7 + $0xd0] sm:$0xff]
    %v438 = vld [vmem:[#allocation7 + $0xd8] sm:$0xff]
    %v439 = vld [vmem:[#allocation7 + $0xe0] sm:$0xff]
    %v440 = vld [vmem:[#allocation7 + $0xe8] sm:$0xff]
    %v441 = vld [vmem:[#allocation7 + $0xf0] sm:$0xff]
    %v442 = vld [vmem:[#allocation7 + $0xf8] sm:$0xff]
    %v443 = vld [vmem:[#allocation7 + $0x100] sm:$0xff]
    %v444 = vld [vmem:[#allocation7 + $0x108] sm:$0xff]
    %v445 = vld [vmem:[#allocation7 + $0x110] sm:$0xff]
    %v446 = vld [vmem:[#allocation7 + $0x118] sm:$0xff]
    %v447 = vld [vmem:[#allocation7 + $0x120] sm:$0xff]
    %v448 = vld [vmem:[#allocation7 + $0x128] sm:$0xff]
    %v449 = vld [vmem:[#allocation7 + $0x130] sm:$0xff]
    %v450 = vld [vmem:[#allocation7 + $0x138] sm:$0xff]
    %v451 = vld [vmem:[#allocation7 + $0x140] sm:$0xff]
    %v452 = vld [vmem:[#allocation7 + $0x148] sm:$0xff]
    %v453 = vld [vmem:[#allocation7 + $0x150] sm:$0xff]
    %v454 = vld [vmem:[#allocation7 + $0x158] sm:$0xff]
    %v455 = vld [vmem:[#allocation7 + $0x160] sm:$0xff]
    %v456 = vld [vmem:[#allocation7 + $0x168] sm:$0xff]
    %v457 = vld [vmem:[#allocation7 + $0x170] sm:$0xff]
    %v458 = vld [vmem:[#allocation7 + $0x178] sm:$0xff]
    %v459 = vld [vmem:[%s15] sm:$0x7]
    %v461 = vlaneseq
    %v462 = vshrl.u32 %v461, 7
    %v463 = vsub.s32 0, %v462
    %v464 = vrot.slane %v459, %v463
    %v465 = vlaneseq
    %v466 = vshrl.u32 %v465, 7
    %v467 = vsub.s32 1, %v466
    %v468 = vrot.slane %v459, %v467
    %v469 = vlaneseq
    %v470 = vshrl.u32 %v469, 7
    %v471 = vsub.s32 2, %v470
    %v472 = vrot.slane %v459, %v471
    %476 = vmatprep.subr.mxu0 %v457
    %477 = vmatpush1.msra.mxu0 %v456
    %478 = vmatprep.subr.mxu0 %v454
    %479 = vmatpush1.msra.mxu0 %v453
    %480 = vmatprep.subr.mxu0 %v451
    %481 = vmatpush1.msra.mxu0 %v450
    %482 = vmatprep.subr.mxu0 %v448
    %483 = vmatpush1.msra.mxu0 %v447
    %484 = vmatprep.subr.mxu0 %v445
    %485 = vmatpush1.msra.mxu0 %v444
    %486 = vmatprep.subr.mxu0 %v442
    %487 = vmatpush1.msra.mxu0 %v441
    %488 = vmatprep.subr.mxu0 %v439
    %489 = vmatpush1.msra.mxu0 %v438
    %490 = vmatprep.subr.mxu0 %v436
    %491 = vmatpush1.msra.mxu0 %v435
    %492 = vmatprep.subr.mxu0 %v433
    %493 = vmatpush1.msra.mxu0 %v432
    %494 = vmatprep.subr.mxu0 %v430
    %495 = vmatpush1.msra.mxu0 %v429
    %496 = vmatprep.subr.mxu0 %v427
    %497 = vmatpush1.msra.mxu0 %v426
    %498 = vmatprep.subr.mxu0 %v424
    %499 = vmatpush1.msra.mxu0 %v423
    %500 = vmatprep.subr.mxu0 %v421
    %501 = vmatpush1.msra.mxu0 %v420
    %502 = vmatprep.subr.mxu0 %v418
    %503 = vmatpush1.msra.mxu0 %v417
    %504 = vmatprep.subr.mxu0 %v415
    %505 = vmatpush1.msra.mxu0 %v414
    %506 = vmatprep.subr.mxu0 %v412
    %507 = vmatpush1.msra.mxu0 %v411
    %508 = vmatprep.subr.mxu0 0.0
    %509 = vmatpush2.msra.mxu0 0.0
    %510 = vmatprep.subr.mxu0 0.0
    %511 = vmatpush2.msra.mxu0 0.0
    %512 = vmatprep.subr.mxu0 0.0
    %513 = vmatpush2.msra.mxu0 0.0
    %514 = vmatprep.subr.mxu0 0.0
    %515 = vmatpush2.msra.mxu0 0.0
    %516 = vmatprep.subr.mxu0 0.0
    %517 = vmatpush2.msra.mxu0 0.0
    %518 = vmatprep.subr.mxu0 0.0
    %519 = vmatpush2.msra.mxu0 0.0
    %520 = vmatprep.subr.mxu0 0.0
    %521 = vmatpush2.msra.mxu0 0.0
    %522 = vmatprep.subr.mxu0 0.0
    %523 = vmatpush2.msra.mxu0 0.0
    %524 = vmatprep.subr.mxu0 0.0
    %525 = vmatpush2.msra.mxu0 0.0
    %526 = vmatprep.subr.mxu0 0.0
    %527 = vmatpush2.msra.mxu0 0.0
    %528 = vmatprep.subr.mxu0 0.0
    %529 = vmatpush2.msra.mxu0 0.0
    %530 = vmatprep.subr.mxu0 0.0
    %531 = vmatpush2.msra.mxu0 0.0
    %532 = vmatprep.subr.mxu0 0.0
    %533 = vmatpush2.msra.mxu0 0.0
    %534 = vmatprep.subr.mxu0 0.0
    %535 = vmatpush2.msra.mxu0 0.0
    %536 = vmatprep.subr.mxu0 0.0
    %537 = vmatpush2.msra.mxu0 0.0
    %538 = vmatprep.subr.mxu0 0.0
    %539 = vmatpush2.msra.mxu0 0.0
    %540 = vmatprep.mubr.f32.mxu0 0.0
    %541 = vmatmul.mubr.f32.gmra.mxu0 %v402
    %v542 = vpop.f32.mrf.mxu0
    %v543 = vadd.f32 %v464, %v542
    %v544 = vpop.f32.mrf.mxu0
    %v545 = vadd.f32 %v468, %v544
    %546 = vdwg.mxu0
    %547 = vmatprep.subr.mxu0 0.0
    %548 = vmatpush1.msra.mxu0 %v458
    %549 = vmatprep.subr.mxu0 0.0
    %550 = vmatpush1.msra.mxu0 %v455
    %551 = vmatprep.subr.mxu0 0.0
    %552 = vmatpush1.msra.mxu0 %v452
    %553 = vmatprep.subr.mxu0 0.0
    %554 = vmatpush1.msra.mxu0 %v449
    %555 = vmatprep.subr.mxu0 0.0
    %556 = vmatpush1.msra.mxu0 %v446
    %557 = vmatprep.subr.mxu0 0.0
    %558 = vmatpush1.msra.mxu0 %v443
    %559 = vmatprep.subr.mxu0 0.0
    %560 = vmatpush1.msra.mxu0 %v440
    %561 = vmatprep.subr.mxu0 0.0
    %562 = vmatpush1.msra.mxu0 %v437
    %563 = vmatprep.subr.mxu0 0.0
    %564 = vmatpush1.msra.mxu0 %v434
    %565 = vmatprep.subr.mxu0 0.0
    %566 = vmatpush1.msra.mxu0 %v431
    %567 = vmatprep.subr.mxu0 0.0
    %568 = vmatpush1.msra.mxu0 %v428
    %569 = vmatprep.subr.mxu0 0.0
    %570 = vmatpush1.msra.mxu0 %v425
    %571 = vmatprep.subr.mxu0 0.0
    %572 = vmatpush1.msra.mxu0 %v422
    %573 = vmatprep.subr.mxu0 0.0
    %574 = vmatpush1.msra.mxu0 %v419
    %575 = vmatprep.subr.mxu0 0.0
    %576 = vmatpush1.msra.mxu0 %v416
    %577 = vmatprep.subr.mxu0 0.0
    %578 = vmatpush1.msra.mxu0 %v413
    %579 = vmatprep.subr.mxu0 0.0
    %580 = vmatpush2.msra.mxu0 0.0
    %581 = vmatprep.subr.mxu0 0.0
    %582 = vmatpush2.msra.mxu0 0.0
    %583 = vmatprep.subr.mxu0 0.0
    %584 = vmatpush2.msra.mxu0 0.0
    %585 = vmatprep.subr.mxu0 0.0
    %586 = vmatpush2.msra.mxu0 0.0
    %587 = vmatprep.subr.mxu0 0.0
    %588 = vmatpush2.msra.mxu0 0.0
    %589 = vmatprep.subr.mxu0 0.0
    %590 = vmatpush2.msra.mxu0 0.0
    %591 = vmatprep.subr.mxu0 0.0
    %592 = vmatpush2.msra.mxu0 0.0
    %593 = vmatprep.subr.mxu0 0.0
    %594 = vmatpush2.msra.mxu0 0.0
    %595 = vmatprep.subr.mxu0 0.0
    %596 = vmatpush2.msra.mxu0 0.0
    %597 = vmatprep.subr.mxu0 0.0
    %598 = vmatpush2.msra.mxu0 0.0
    %599 = vmatprep.subr.mxu0 0.0
    %600 = vmatpush2.msra.mxu0 0.0
    %601 = vmatprep.subr.mxu0 0.0
    %602 = vmatpush2.msra.mxu0 0.0
    %603 = vmatprep.subr.mxu0 0.0
    %604 = vmatpush2.msra.mxu0 0.0
    %605 = vmatprep.subr.mxu0 0.0
    %606 = vmatpush2.msra.mxu0 0.0
    %607 = vmatprep.subr.mxu0 0.0
    %608 = vmatpush2.msra.mxu0 0.0
    %609 = vmatprep.subr.mxu0 0.0
    %610 = vmatpush2.msra.mxu0 0.0
    %611 = vmatprep.mubr.f32.mxu0 0.0
    %612 = vmatmul.mubr.f32.gmra.mxu0 %v402
    %v613 = vpop.f32.mrf.mxu0
    %v614 = vadd.f32 %v472, %v613
    %v615 = vpop.f32.mrf.mxu0
    %616 = vdwg.mxu0
    %v617 = vld [vmem:[#allocation8] sm:$0xff]
    %v618 = vld [vmem:[#allocation8 + $0x8] sm:$0xff]
    %v619 = vld [vmem:[#allocation8 + $0x10] sm:$0xff]
    %v620 = vld [vmem:[#allocation8 + $0x18] sm:$0xff]
    %v621 = vld [vmem:[#allocation8 + $0x20] sm:$0xff]
    %v622 = vld [vmem:[#allocation8 + $0x28] sm:$0xff]
    %v623 = vld [vmem:[#allocation8 + $0x30] sm:$0xff]
    %v624 = vld [vmem:[#allocation8 + $0x38] sm:$0xff]
    %v625 = vld [vmem:[#allocation8 + $0x40] sm:$0xff]
    %v626 = vld [vmem:[#allocation8 + $0x48] sm:$0xff]
    %v627 = vld [vmem:[#allocation8 + $0x50] sm:$0xff]
    %v628 = vld [vmem:[#allocation8 + $0x58] sm:$0xff]
    %v629 = vld [vmem:[#allocation8 + $0x60] sm:$0xff]
    %v630 = vld [vmem:[#allocation8 + $0x68] sm:$0xff]
    %v631 = vld [vmem:[#allocation8 + $0x70] sm:$0xff]
    %v632 = vld [vmem:[#allocation8 + $0x78] sm:$0xff]
    %v633 = vld [vmem:[#allocation8 + $0x80] sm:$0xff]
    %v634 = vld [vmem:[#allocation8 + $0x88] sm:$0xff]
    %v635 = vld [vmem:[#allocation8 + $0x90] sm:$0xff]
    %v636 = vld [vmem:[#allocation8 + $0x98] sm:$0xff]
    %v637 = vld [vmem:[#allocation8 + $0xa0] sm:$0xff]
    %v638 = vld [vmem:[#allocation8 + $0xa8] sm:$0xff]
    %v639 = vld [vmem:[#allocation8 + $0xb0] sm:$0xff]
    %v640 = vld [vmem:[#allocation8 + $0xb8] sm:$0xff]
    %v641 = vld [vmem:[#allocation8 + $0xc0] sm:$0xff]
    %v642 = vld [vmem:[#allocation8 + $0xc8] sm:$0xff]
    %v643 = vld [vmem:[#allocation8 + $0xd0] sm:$0xff]
    %v644 = vld [vmem:[#allocation8 + $0xd8] sm:$0xff]
    %v645 = vld [vmem:[#allocation8 + $0xe0] sm:$0xff]
    %v646 = vld [vmem:[#allocation8 + $0xe8] sm:$0xff]
    %v647 = vld [vmem:[#allocation8 + $0xf0] sm:$0xff]
    %v648 = vld [vmem:[#allocation8 + $0xf8] sm:$0xff]
    %v649 = vld [vmem:[#allocation8 + $0x100] sm:$0xff]
    %v650 = vld [vmem:[#allocation8 + $0x108] sm:$0xff]
    %v651 = vld [vmem:[#allocation8 + $0x110] sm:$0xff]
    %v652 = vld [vmem:[#allocation8 + $0x118] sm:$0xff]
    %v653 = vld [vmem:[#allocation8 + $0x120] sm:$0xff]
    %v654 = vld [vmem:[#allocation8 + $0x128] sm:$0xff]
    %v655 = vld [vmem:[#allocation8 + $0x130] sm:$0xff]
    %v656 = vld [vmem:[#allocation8 + $0x138] sm:$0xff]
    %v657 = vld [vmem:[#allocation8 + $0x140] sm:$0xff]
    %v658 = vld [vmem:[#allocation8 + $0x148] sm:$0xff]
    %v659 = vld [vmem:[#allocation8 + $0x150] sm:$0xff]
    %v660 = vld [vmem:[#allocation8 + $0x158] sm:$0xff]
    %v661 = vld [vmem:[#allocation8 + $0x160] sm:$0xff]
    %v662 = vld [vmem:[#allocation8 + $0x168] sm:$0xff]
    %v663 = vld [vmem:[#allocation8 + $0x170] sm:$0xff]
    %v664 = vld [vmem:[#allocation8 + $0x178] sm:$0xff]
    %v665 = vld [vmem:[%s16] sm:$0x7]
    %v667 = vlaneseq
    %v668 = vshrl.u32 %v667, 7
    %v669 = vsub.s32 0, %v668
    %v670 = vrot.slane %v665, %v669
    %v671 = vlaneseq
    %v672 = vshrl.u32 %v671, 7
    %v673 = vsub.s32 1, %v672
    %v674 = vrot.slane %v665, %v673
    %v675 = vlaneseq
    %v676 = vshrl.u32 %v675, 7
    %v677 = vsub.s32 2, %v676
    %v678 = vrot.slane %v665, %v677
    %682 = vmatprep.subr.mxu0 %v663
    %683 = vmatpush1.msra.mxu0 %v662
    %684 = vmatprep.subr.mxu0 %v660
    %685 = vmatpush1.msra.mxu0 %v659
    %686 = vmatprep.subr.mxu0 %v657
    %687 = vmatpush1.msra.mxu0 %v656
    %688 = vmatprep.subr.mxu0 %v654
    %689 = vmatpush1.msra.mxu0 %v653
    %690 = vmatprep.subr.mxu0 %v651
    %691 = vmatpush1.msra.mxu0 %v650
    %692 = vmatprep.subr.mxu0 %v648
    %693 = vmatpush1.msra.mxu0 %v647
    %694 = vmatprep.subr.mxu0 %v645
    %695 = vmatpush1.msra.mxu0 %v644
    %696 = vmatprep.subr.mxu0 %v642
    %697 = vmatpush1.msra.mxu0 %v641
    %698 = vmatprep.subr.mxu0 %v639
    %699 = vmatpush1.msra.mxu0 %v638
    %700 = vmatprep.subr.mxu0 %v636
    %701 = vmatpush1.msra.mxu0 %v635
    %702 = vmatprep.subr.mxu0 %v633
    %703 = vmatpush1.msra.mxu0 %v632
    %704 = vmatprep.subr.mxu0 %v630
    %705 = vmatpush1.msra.mxu0 %v629
    %706 = vmatprep.subr.mxu0 %v627
    %707 = vmatpush1.msra.mxu0 %v626
    %708 = vmatprep.subr.mxu0 %v624
    %709 = vmatpush1.msra.mxu0 %v623
    %710 = vmatprep.subr.mxu0 %v621
    %711 = vmatpush1.msra.mxu0 %v620
    %712 = vmatprep.subr.mxu0 %v618
    %713 = vmatpush1.msra.mxu0 %v617
    %714 = vmatprep.subr.mxu0 0.0
    %715 = vmatpush2.msra.mxu0 0.0
    %716 = vmatprep.subr.mxu0 0.0
    %717 = vmatpush2.msra.mxu0 0.0
    %718 = vmatprep.subr.mxu0 0.0
    %719 = vmatpush2.msra.mxu0 0.0
    %720 = vmatprep.subr.mxu0 0.0
    %721 = vmatpush2.msra.mxu0 0.0
    %722 = vmatprep.subr.mxu0 0.0
    %723 = vmatpush2.msra.mxu0 0.0
    %724 = vmatprep.subr.mxu0 0.0
    %725 = vmatpush2.msra.mxu0 0.0
    %726 = vmatprep.subr.mxu0 0.0
    %727 = vmatpush2.msra.mxu0 0.0
    %728 = vmatprep.subr.mxu0 0.0
    %729 = vmatpush2.msra.mxu0 0.0
    %730 = vmatprep.subr.mxu0 0.0
    %731 = vmatpush2.msra.mxu0 0.0
    %732 = vmatprep.subr.mxu0 0.0
    %733 = vmatpush2.msra.mxu0 0.0
    %734 = vmatprep.subr.mxu0 0.0
    %735 = vmatpush2.msra.mxu0 0.0
    %736 = vmatprep.subr.mxu0 0.0
    %737 = vmatpush2.msra.mxu0 0.0
    %738 = vmatprep.subr.mxu0 0.0
    %739 = vmatpush2.msra.mxu0 0.0
    %740 = vmatprep.subr.mxu0 0.0
    %741 = vmatpush2.msra.mxu0 0.0
    %742 = vmatprep.subr.mxu0 0.0
    %743 = vmatpush2.msra.mxu0 0.0
    %744 = vmatprep.subr.mxu0 0.0
    %745 = vmatpush2.msra.mxu0 0.0
    %746 = vmatprep.mubr.f32.mxu0 0.0
    %747 = vmatmul.mubr.f32.gmra.mxu0 %v410
    %v748 = vpop.f32.mrf.mxu0
    %v749 = vadd.f32 %v670, %v748
    %v750 = vpop.f32.mrf.mxu0
    %v751 = vadd.f32 %v674, %v750
    %752 = vdwg.mxu0
    %753 = vmatprep.subr.mxu0 0.0
    %754 = vmatpush1.msra.mxu0 %v664
    %755 = vmatprep.subr.mxu0 0.0
    %756 = vmatpush1.msra.mxu0 %v661
    %757 = vmatprep.subr.mxu0 0.0
    %758 = vmatpush1.msra.mxu0 %v658
    %759 = vmatprep.subr.mxu0 0.0
    %760 = vmatpush1.msra.mxu0 %v655
    %761 = vmatprep.subr.mxu0 0.0
    %762 = vmatpush1.msra.mxu0 %v652
    %763 = vmatprep.subr.mxu0 0.0
    %764 = vmatpush1.msra.mxu0 %v649
    %765 = vmatprep.subr.mxu0 0.0
    %766 = vmatpush1.msra.mxu0 %v646
    %767 = vmatprep.subr.mxu0 0.0
    %768 = vmatpush1.msra.mxu0 %v643
    %769 = vmatprep.subr.mxu0 0.0
    %770 = vmatpush1.msra.mxu0 %v640
    %771 = vmatprep.subr.mxu0 0.0
    %772 = vmatpush1.msra.mxu0 %v637
    %773 = vmatprep.subr.mxu0 0.0
    %774 = vmatpush1.msra.mxu0 %v634
    %775 = vmatprep.subr.mxu0 0.0
    %776 = vmatpush1.msra.mxu0 %v631
    %777 = vmatprep.subr.mxu0 0.0
    %778 = vmatpush1.msra.mxu0 %v628
    %779 = vmatprep.subr.mxu0 0.0
    %780 = vmatpush1.msra.mxu0 %v625
    %781 = vmatprep.subr.mxu0 0.0
    %782 = vmatpush1.msra.mxu0 %v622
    %783 = vmatprep.subr.mxu0 0.0
    %784 = vmatpush1.msra.mxu0 %v619
    %785 = vmatprep.subr.mxu0 0.0
    %786 = vmatpush2.msra.mxu0 0.0
    %787 = vmatprep.subr.mxu0 0.0
    %788 = vmatpush2.msra.mxu0 0.0
    %789 = vmatprep.subr.mxu0 0.0
    %790 = vmatpush2.msra.mxu0 0.0
    %791 = vmatprep.subr.mxu0 0.0
    %792 = vmatpush2.msra.mxu0 0.0
    %793 = vmatprep.subr.mxu0 0.0
    %794 = vmatpush2.msra.mxu0 0.0
    %795 = vmatprep.subr.mxu0 0.0
    %796 = vmatpush2.msra.mxu0 0.0
    %797 = vmatprep.subr.mxu0 0.0
    %798 = vmatpush2.msra.mxu0 0.0
    %799 = vmatprep.subr.mxu0 0.0
    %800 = vmatpush2.msra.mxu0 0.0
    %801 = vmatprep.subr.mxu0 0.0
    %802 = vmatpush2.msra.mxu0 0.0
    %803 = vmatprep.subr.mxu0 0.0
    %804 = vmatpush2.msra.mxu0 0.0
    %805 = vmatprep.subr.mxu0 0.0
    %806 = vmatpush2.msra.mxu0 0.0
    %807 = vmatprep.subr.mxu0 0.0
    %808 = vmatpush2.msra.mxu0 0.0
    %809 = vmatprep.subr.mxu0 0.0
    %810 = vmatpush2.msra.mxu0 0.0
    %811 = vmatprep.subr.mxu0 0.0
    %812 = vmatpush2.msra.mxu0 0.0
    %813 = vmatprep.subr.mxu0 0.0
    %814 = vmatpush2.msra.mxu0 0.0
    %815 = vmatprep.subr.mxu0 0.0
    %816 = vmatpush2.msra.mxu0 0.0
    %817 = vmatprep.mubr.f32.mxu0 0.0
    %818 = vmatmul.mubr.f32.gmra.mxu0 %v410
    %v819 = vpop.f32.mrf.mxu0
    %v820 = vadd.f32 %v678, %v819
    %v821 = vpop.f32.mrf.mxu0
    %822 = vdwg.mxu0
    %v823 = vadd.f32 %v543, %v749
    %v824 = vadd.f32 %v545, %v751
    %v825 = vmul.f32 %v823, 0.5
    %v826 = vmul.f32 %v824, 0.5
    %v827 = vtanh.pop %v825
    %v828 = vtanh.pop %v826
    %v829 = vmul.f32 %v827, 0.5
    %v830 = vmul.f32 %v828, 0.5
    %v831 = vadd.f32 %v829, 0.5
    %v832 = vadd.f32 %v830, 0.5
    %v833 = vmul.f32 %v831, %v820
    %v834 = vadd.f32 %v614, %v833
    %v835 = vtanh.pop %v834
    %v836 = vsub.f32 1.0, %v832
    %v837 = vmul.f32 %v836, %v835
    %v838 = vmul.f32 %v832, %v410
    %v839 = vadd.f32 %v837, %v838
    %840 = vst [vmem:[%s22] sm:$0xff] %v839
    %s841 = scalar_lea.vmem %s1, 8
    %v842 = vld [vmem:[%s841] sm:$0xff]
    %v843 = vmul.f32 %v842, %v407
    %s844 = scalar_lea.vmem [#allocation7], 384
    %v845 = vld [vmem:[%s844] sm:$0xff]
    %v846 = vld [vmem:[%s844 + $0x8] sm:$0xff]
    %v847 = vld [vmem:[%s844 + $0x10] sm:$0xff]
    %v848 = vld [vmem:[%s844 + $0x18] sm:$0xff]
    %v849 = vld [vmem:[%s844 + $0x20] sm:$0xff]
    %v850 = vld [vmem:[%s844 + $0x28] sm:$0xff]
    %v851 = vld [vmem:[%s844 + $0x30] sm:$0xff]
    %v852 = vld [vmem:[%s844 + $0x38] sm:$0xff]
    %v853 = vld [vmem:[%s844 + $0x40] sm:$0xff]
    %v854 = vld [vmem:[%s844 + $0x48] sm:$0xff]
    %v855 = vld [vmem:[%s844 + $0x50] sm:$0xff]
    %v856 = vld [vmem:[%s844 + $0x58] sm:$0xff]
    %v857 = vld [vmem:[%s844 + $0x60] sm:$0xff]
    %v858 = vld [vmem:[%s844 + $0x68] sm:$0xff]
    %v859 = vld [vmem:[%s844 + $0x70] sm:$0xff]
    %v860 = vld [vmem:[%s844 + $0x78] sm:$0xff]
    %v861 = vld [vmem:[%s844 + $0x80] sm:$0xff]
    %v862 = vld [vmem:[%s844 + $0x88] sm:$0xff]
    %v863 = vld [vmem:[%s844 + $0x90] sm:$0xff]
    %v864 = vld [vmem:[%s844 + $0x98] sm:$0xff]
    %v865 = vld [vmem:[%s844 + $0xa0] sm:$0xff]
    %v866 = vld [vmem:[%s844 + $0xa8] sm:$0xff]
    %v867 = vld [vmem:[%s844 + $0xb0] sm:$0xff]
    %v868 = vld [vmem:[%s844 + $0xb8] sm:$0xff]
    %v869 = vld [vmem:[%s844 + $0xc0] sm:$0xff]
    %v870 = vld [vmem:[%s844 + $0xc8] sm:$0xff]
    %v871 = vld [vmem:[%s844 + $0xd0] sm:$0xff]
    %v872 = vld [vmem:[%s844 + $0xd8] sm:$0xff]
    %v873 = vld [vmem:[%s844 + $0xe0] sm:$0xff]
    %v874 = vld [vmem:[%s844 + $0xe8] sm:$0xff]
    %v875 = vld [vmem:[%s844 + $0xf0] sm:$0xff]
    %v876 = vld [vmem:[%s844 + $0xf8] sm:$0xff]
    %v877 = vld [vmem:[%s844 + $0x100] sm:$0xff]
    %v878 = vld [vmem:[%s844 + $0x108] sm:$0xff]
    %v879 = vld [vmem:[%s844 + $0x110] sm:$0xff]
    %v880 = vld [vmem:[%s844 + $0x118] sm:$0xff]
    %v881 = vld [vmem:[%s844 + $0x120] sm:$0xff]
    %v882 = vld [vmem:[%s844 + $0x128] sm:$0xff]
    %v883 = vld [vmem:[%s844 + $0x130] sm:$0xff]
    %v884 = vld [vmem:[%s844 + $0x138] sm:$0xff]
    %v885 = vld [vmem:[%s844 + $0x140] sm:$0xff]
    %v886 = vld [vmem:[%s844 + $0x148] sm:$0xff]
    %v887 = vld [vmem:[%s844 + $0x150] sm:$0xff]
    %v888 = vld [vmem:[%s844 + $0x158] sm:$0xff]
    %v889 = vld [vmem:[%s844 + $0x160] sm:$0xff]
    %v890 = vld [vmem:[%s844 + $0x168] sm:$0xff]
    %v891 = vld [vmem:[%s844 + $0x170] sm:$0xff]
    %v892 = vld [vmem:[%s844 + $0x178] sm:$0xff]
    %s893 = scalar_lea.vmem %s15, 3
    %v894 = vld [vmem:[%s893] sm:$0x7]
    %v896 = vlaneseq
    %v897 = vshrl.u32 %v896, 7
    %v898 = vsub.s32 0, %v897
    %v899 = vrot.slane %v894, %v898
    %v900 = vlaneseq
    %v901 = vshrl.u32 %v900, 7
    %v902 = vsub.s32 1, %v901
    %v903 = vrot.slane %v894, %v902
    %v904 = vlaneseq
    %v905 = vshrl.u32 %v904, 7
    %v906 = vsub.s32 2, %v905
    %v907 = vrot.slane %v894, %v906
    %911 = vmatprep.subr.mxu0 %v891
    %912 = vmatpush1.msra.mxu0 %v890
    %913 = vmatprep.subr.mxu0 %v888
    %914 = vmatpush1.msra.mxu0 %v887
    %915 = vmatprep.subr.mxu0 %v885
    %916 = vmatpush1.msra.mxu0 %v884
    %917 = vmatprep.subr.mxu0 %v882
    %918 = vmatpush1.msra.mxu0 %v881
    %919 = vmatprep.subr.mxu0 %v879
    %920 = vmatpush1.msra.mxu0 %v878
    %921 = vmatprep.subr.mxu0 %v876
    %922 = vmatpush1.msra.mxu0 %v875
    %923 = vmatprep.subr.mxu0 %v873
    %924 = vmatpush1.msra.mxu0 %v872
    %925 = vmatprep.subr.mxu0 %v870
    %926 = vmatpush1.msra.mxu0 %v869
    %927 = vmatprep.subr.mxu0 %v867
    %928 = vmatpush1.msra.mxu0 %v866
    %929 = vmatprep.subr.mxu0 %v864
    %930 = vmatpush1.msra.mxu0 %v863
    %931 = vmatprep.subr.mxu0 %v861
    %932 = vmatpush1.msra.mxu0 %v860
    %933 = vmatprep.subr.mxu0 %v858
    %934 = vmatpush1.msra.mxu0 %v857
    %935 = vmatprep.subr.mxu0 %v855
    %936 = vmatpush1.msra.mxu0 %v854
    %937 = vmatprep.subr.mxu0 %v852
    %938 = vmatpush1.msra.mxu0 %v851
    %939 = vmatprep.subr.mxu0 %v849
    %940 = vmatpush1.msra.mxu0 %v848
    %941 = vmatprep.subr.mxu0 %v846
    %942 = vmatpush1.msra.mxu0 %v845
    %943 = vmatprep.subr.mxu0 0.0
    %944 = vmatpush2.msra.mxu0 0.0
    %945 = vmatprep.subr.mxu0 0.0
    %946 = vmatpush2.msra.mxu0 0.0
    %947 = vmatprep.subr.mxu0 0.0
    %948 = vmatpush2.msra.mxu0 0.0
    %949 = vmatprep.subr.mxu0 0.0
    %950 = vmatpush2.msra.mxu0 0.0
    %951 = vmatprep.subr.mxu0 0.0
    %952 = vmatpush2.msra.mxu0 0.0
    %953 = vmatprep.subr.mxu0 0.0
    %954 = vmatpush2.msra.mxu0 0.0
    %955 = vmatprep.subr.mxu0 0.0
    %956 = vmatpush2.msra.mxu0 0.0
    %957 = vmatprep.subr.mxu0 0.0
    %958 = vmatpush2.msra.mxu0 0.0
    %959 = vmatprep.subr.mxu0 0.0
    %960 = vmatpush2.msra.mxu0 0.0
    %961 = vmatprep.subr.mxu0 0.0
    %962 = vmatpush2.msra.mxu0 0.0
    %963 = vmatprep.subr.mxu0 0.0
    %964 = vmatpush2.msra.mxu0 0.0
    %965 = vmatprep.subr.mxu0 0.0
    %966 = vmatpush2.msra.mxu0 0.0
    %967 = vmatprep.subr.mxu0 0.0
    %968 = vmatpush2.msra.mxu0 0.0
    %969 = vmatprep.subr.mxu0 0.0
    %970 = vmatpush2.msra.mxu0 0.0
    %971 = vmatprep.subr.mxu0 0.0
    %972 = vmatpush2.msra.mxu0 0.0
    %973 = vmatprep.subr.mxu0 0.0
    %974 = vmatpush2.msra.mxu0 0.0
    %975 = vmatprep.mubr.f32.mxu0 0.0
    %976 = vmatmul.mubr.f32.gmra.mxu0 %v839
    %v977 = vpop.f32.mrf.mxu0
    %v978 = vadd.f32 %v899, %v977
    %v979 = vpop.f32.mrf.mxu0
    %v980 = vadd.f32 %v903, %v979
    %981 = vdwg.mxu0
    %982 = vmatprep.subr.mxu0 0.0
    %983 = vmatpush1.msra.mxu0 %v892
    %984 = vmatprep.subr.mxu0 0.0
    %985 = vmatpush1.msra.mxu0 %v889
    %986 = vmatprep.subr.mxu0 0.0
    %987 = vmatpush1.msra.mxu0 %v886
    %988 = vmatprep.subr.mxu0 0.0
    %989 = vmatpush1.msra.mxu0 %v883
    %990 = vmatprep.subr.mxu0 0.0
    %991 = vmatpush1.msra.mxu0 %v880
    %992 = vmatprep.subr.mxu0 0.0
    %993 = vmatpush1.msra.mxu0 %v877
    %994 = vmatprep.subr.mxu0 0.0
    %995 = vmatpush1.msra.mxu0 %v874
    %996 = vmatprep.subr.mxu0 0.0
    %997 = vmatpush1.msra.mxu0 %v871
    %998 = vmatprep.subr.mxu0 0.0
    %999 = vmatpush1.msra.mxu0 %v868
    %1000 = vmatprep.subr.mxu0 0.0
    %1001 = vmatpush1.msra.mxu0 %v865
    %1002 = vmatprep.subr.mxu0 0.0
    %1003 = vmatpush1.msra.mxu0 %v862
    %1004 = vmatprep.subr.mxu0 0.0
    %1005 = vmatpush1.msra.mxu0 %v859
    %1006 = vmatprep.subr.mxu0 0.0
    %1007 = vmatpush1.msra.mxu0 %v856
    %1008 = vmatprep.subr.mxu0 0.0
    %1009 = vmatpush1.msra.mxu0 %v853
    %1010 = vmatprep.subr.mxu0 0.0
    %1011 = vmatpush1.msra.mxu0 %v850
    %1012 = vmatprep.subr.mxu0 0.0
    %1013 = vmatpush1.msra.mxu0 %v847
    %1014 = vmatprep.subr.mxu0 0.0
    %1015 = vmatpush2.msra.mxu0 0.0
    %1016 = vmatprep.subr.mxu0 0.0
    %1017 = vmatpush2.msra.mxu0 0.0
    %1018 = vmatprep.subr.mxu0 0.0
    %1019 = vmatpush2.msra.mxu0 0.0
    %1020 = vmatprep.subr.mxu0 0.0
    %1021 = vmatpush2.msra.mxu0 0.0
    %1022 = vmatprep.subr.mxu0 0.0
    %1023 = vmatpush2.msra.mxu0 0.0
    %1024 = vmatprep.subr.mxu0 0.0
    %1025 = vmatpush2.msra.mxu0 0.0
    %1026 = vmatprep.subr.mxu0 0.0
    %1027 = vmatpush2.msra.mxu0 0.0
    %1028 = vmatprep.subr.mxu0 0.0
    %1029 = vmatpush2.msra.mxu0 0.0
    %1030 = vmatprep.subr.mxu0 0.0
    %1031 = vmatpush2.msra.mxu0 0.0
    %1032 = vmatprep.subr.mxu0 0.0
    %1033 = vmatpush2.msra.mxu0 0.0
    %1034 = vmatprep.subr.mxu0 0.0
    %1035 = vmatpush2.msra.mxu0 0.0
    %1036 = vmatprep.subr.mxu0 0.0
    %1037 = vmatpush2.msra.mxu0 0.0
    %1038 = vmatprep.subr.mxu0 0.0
    %1039 = vmatpush2.msra.mxu0 0.0
    %1040 = vmatprep.subr.mxu0 0.0
    %1041 = vmatpush2.msra.mxu0 0.0
    %1042 = vmatprep.subr.mxu0 0.0
    %1043 = vmatpush2.msra.mxu0 0.0
    %1044 = vmatprep.subr.mxu0 0.0
    %1045 = vmatpush2.msra.mxu0 0.0
    %1046 = vmatprep.mubr.f32.mxu0 0.0
    %1047 = vmatmul.mubr.f32.gmra.mxu0 %v839
    %v1048 = vpop.f32.mrf.mxu0
    %v1049 = vadd.f32 %v907, %v1048
    %v1050 = vpop.f32.mrf.mxu0
    %1051 = vdwg.mxu0
    %s1052 = scalar_lea.vmem [#allocation8], 384
    %v1053 = vld [vmem:[%s1052] sm:$0xff]
    %v1054 = vld [vmem:[%s1052 + $0x8] sm:$0xff]
    %v1055 = vld [vmem:[%s1052 + $0x10] sm:$0xff]
    %v1056 = vld [vmem:[%s1052 + $0x18] sm:$0xff]
    %v1057 = vld [vmem:[%s1052 + $0x20] sm:$0xff]
    %v1058 = vld [vmem:[%s1052 + $0x28] sm:$0xff]
    %v1059 = vld [vmem:[%s1052 + $0x30] sm:$0xff]
    %v1060 = vld [vmem:[%s1052 + $0x38] sm:$0xff]
    %v1061 = vld [vmem:[%s1052 + $0x40] sm:$0xff]
    %v1062 = vld [vmem:[%s1052 + $0x48] sm:$0xff]
    %v1063 = vld [vmem:[%s1052 + $0x50] sm:$0xff]
    %v1064 = vld [vmem:[%s1052 + $0x58] sm:$0xff]
    %v1065 = vld [vmem:[%s1052 + $0x60] sm:$0xff]
    %v1066 = vld [vmem:[%s1052 + $0x68] sm:$0xff]
    %v1067 = vld [vmem:[%s1052 + $0x70] sm:$0xff]
    %v1068 = vld [vmem:[%s1052 + $0x78] sm:$0xff]
    %v1069 = vld [vmem:[%s1052 + $0x80] sm:$0xff]
    %v1070 = vld [vmem:[%s1052 + $0x88] sm:$0xff]
    %v1071 = vld [vmem:[%s1052 + $0x90] sm:$0xff]
    %v1072 = vld [vmem:[%s1052 + $0x98] sm:$0xff]
    %v1073 = vld [vmem:[%s1052 + $0xa0] sm:$0xff]
    %v1074 = vld [vmem:[%s1052 + $0xa8] sm:$0xff]
    %v1075 = vld [vmem:[%s1052 + $0xb0] sm:$0xff]
    %v1076 = vld [vmem:[%s1052 + $0xb8] sm:$0xff]
    %v1077 = vld [vmem:[%s1052 + $0xc0] sm:$0xff]
    %v1078 = vld [vmem:[%s1052 + $0xc8] sm:$0xff]
    %v1079 = vld [vmem:[%s1052 + $0xd0] sm:$0xff]
    %v1080 = vld [vmem:[%s1052 + $0xd8] sm:$0xff]
    %v1081 = vld [vmem:[%s1052 + $0xe0] sm:$0xff]
    %v1082 = vld [vmem:[%s1052 + $0xe8] sm:$0xff]
    %v1083 = vld [vmem:[%s1052 + $0xf0] sm:$0xff]
    %v1084 = vld [vmem:[%s1052 + $0xf8] sm:$0xff]
    %v1085 = vld [vmem:[%s1052 + $0x100] sm:$0xff]
    %v1086 = vld [vmem:[%s1052 + $0x108] sm:$0xff]
    %v1087 = vld [vmem:[%s1052 + $0x110] sm:$0xff]
    %v1088 = vld [vmem:[%s1052 + $0x118] sm:$0xff]
    %v1089 = vld [vmem:[%s1052 + $0x120] sm:$0xff]
    %v1090 = vld [vmem:[%s1052 + $0x128] sm:$0xff]
    %v1091 = vld [vmem:[%s1052 + $0x130] sm:$0xff]
    %v1092 = vld [vmem:[%s1052 + $0x138] sm:$0xff]
    %v1093 = vld [vmem:[%s1052 + $0x140] sm:$0xff]
    %v1094 = vld [vmem:[%s1052 + $0x148] sm:$0xff]
    %v1095 = vld [vmem:[%s1052 + $0x150] sm:$0xff]
    %v1096 = vld [vmem:[%s1052 + $0x158] sm:$0xff]
    %v1097 = vld [vmem:[%s1052 + $0x160] sm:$0xff]
    %v1098 = vld [vmem:[%s1052 + $0x168] sm:$0xff]
    %v1099 = vld [vmem:[%s1052 + $0x170] sm:$0xff]
    %v1100 = vld [vmem:[%s1052 + $0x178] sm:$0xff]
    %s1101 = scalar_lea.vmem %s16, 3
    %v1102 = vld [vmem:[%s1101] sm:$0x7]
    %v1104 = vlaneseq
    %v1105 = vshrl.u32 %v1104, 7
    %v1106 = vsub.s32 0, %v1105
    %v1107 = vrot.slane %v1102, %v1106
    %v1108 = vlaneseq
    %v1109 = vshrl.u32 %v1108, 7
    %v1110 = vsub.s32 1, %v1109
    %v1111 = vrot.slane %v1102, %v1110
    %v1112 = vlaneseq
    %v1113 = vshrl.u32 %v1112, 7
    %v1114 = vsub.s32 2, %v1113
    %v1115 = vrot.slane %v1102, %v1114
    %1119 = vmatprep.subr.mxu0 %v1099
    %1120 = vmatpush1.msra.mxu0 %v1098
    %1121 = vmatprep.subr.mxu0 %v1096
    %1122 = vmatpush1.msra.mxu0 %v1095
    %1123 = vmatprep.subr.mxu0 %v1093
    %1124 = vmatpush1.msra.mxu0 %v1092
    %1125 = vmatprep.subr.mxu0 %v1090
    %1126 = vmatpush1.msra.mxu0 %v1089
    %1127 = vmatprep.subr.mxu0 %v1087
    %1128 = vmatpush1.msra.mxu0 %v1086
    %1129 = vmatprep.subr.mxu0 %v1084
    %1130 = vmatpush1.msra.mxu0 %v1083
    %1131 = vmatprep.subr.mxu0 %v1081
    %1132 = vmatpush1.msra.mxu0 %v1080
    %1133 = vmatprep.subr.mxu0 %v1078
    %1134 = vmatpush1.msra.mxu0 %v1077
    %1135 = vmatprep.subr.mxu0 %v1075
    %1136 = vmatpush1.msra.mxu0 %v1074
    %1137 = vmatprep.subr.mxu0 %v1072
    %1138 = vmatpush1.msra.mxu0 %v1071
    %1139 = vmatprep.subr.mxu0 %v1069
    %1140 = vmatpush1.msra.mxu0 %v1068
    %1141 = vmatprep.subr.mxu0 %v1066
    %1142 = vmatpush1.msra.mxu0 %v1065
    %1143 = vmatprep.subr.mxu0 %v1063
    %1144 = vmatpush1.msra.mxu0 %v1062
    %1145 = vmatprep.subr.mxu0 %v1060
    %1146 = vmatpush1.msra.mxu0 %v1059
    %1147 = vmatprep.subr.mxu0 %v1057
    %1148 = vmatpush1.msra.mxu0 %v1056
    %1149 = vmatprep.subr.mxu0 %v1054
    %1150 = vmatpush1.msra.mxu0 %v1053
    %1151 = vmatprep.subr.mxu0 0.0
    %1152 = vmatpush2.msra.mxu0 0.0
    %1153 = vmatprep.subr.mxu0 0.0
    %1154 = vmatpush2.msra.mxu0 0.0
    %1155 = vmatprep.subr.mxu0 0.0
    %1156 = vmatpush2.msra.mxu0 0.0
    %1157 = vmatprep.subr.mxu0 0.0
    %1158 = vmatpush2.msra.mxu0 0.0
    %1159 = vmatprep.subr.mxu0 0.0
    %1160 = vmatpush2.msra.mxu0 0.0
    %1161 = vmatprep.subr.mxu0 0.0
    %1162 = vmatpush2.msra.mxu0 0.0
    %1163 = vmatprep.subr.mxu0 0.0
    %1164 = vmatpush2.msra.mxu0 0.0
    %1165 = vmatprep.subr.mxu0 0.0
    %1166 = vmatpush2.msra.mxu0 0.0
    %1167 = vmatprep.subr.mxu0 0.0
    %1168 = vmatpush2.msra.mxu0 0.0
    %1169 = vmatprep.subr.mxu0 0.0
    %1170 = vmatpush2.msra.mxu0 0.0
    %1171 = vmatprep.subr.mxu0 0.0
    %1172 = vmatpush2.msra.mxu0 0.0
    %1173 = vmatprep.subr.mxu0 0.0
    %1174 = vmatpush2.msra.mxu0 0.0
    %1175 = vmatprep.subr.mxu0 0.0
    %1176 = vmatpush2.msra.mxu0 0.0
    %1177 = vmatprep.subr.mxu0 0.0
    %1178 = vmatpush2.msra.mxu0 0.0
    %1179 = vmatprep.subr.mxu0 0.0
    %1180 = vmatpush2.msra.mxu0 0.0
    %1181 = vmatprep.subr.mxu0 0.0
    %1182 = vmatpush2.msra.mxu0 0.0
    %1183 = vmatprep.mubr.f32.mxu0 0.0
    %1184 = vmatmul.mubr.f32.gmra.mxu0 %v843
    %v1185 = vpop.f32.mrf.mxu0
    %v1186 = vadd.f32 %v1107, %v1185
    %v1187 = vpop.f32.mrf.mxu0
    %v1188 = vadd.f32 %v1111, %v1187
    %1189 = vdwg.mxu0
    %1190 = vmatprep.subr.mxu0 0.0
    %1191 = vmatpush1.msra.mxu0 %v1100
    %1192 = vmatprep.subr.mxu0 0.0
    %1193 = vmatpush1.msra.mxu0 %v1097
    %1194 = vmatprep.subr.mxu0 0.0
    %1195 = vmatpush1.msra.mxu0 %v1094
    %1196 = vmatprep.subr.mxu0 0.0
    %1197 = vmatpush1.msra.mxu0 %v1091
    %1198 = vmatprep.subr.mxu0 0.0
    %1199 = vmatpush1.msra.mxu0 %v1088
    %1200 = vmatprep.subr.mxu0 0.0
    %1201 = vmatpush1.msra.mxu0 %v1085
    %1202 = vmatprep.subr.mxu0 0.0
    %1203 = vmatpush1.msra.mxu0 %v1082
    %1204 = vmatprep.subr.mxu0 0.0
    %1205 = vmatpush1.msra.mxu0 %v1079
    %1206 = vmatprep.subr.mxu0 0.0
    %1207 = vmatpush1.msra.mxu0 %v1076
    %1208 = vmatprep.subr.mxu0 0.0
    %1209 = vmatpush1.msra.mxu0 %v1073
    %1210 = vmatprep.subr.mxu0 0.0
    %1211 = vmatpush1.msra.mxu0 %v1070
    %1212 = vmatprep.subr.mxu0 0.0
    %1213 = vmatpush1.msra.mxu0 %v1067
    %1214 = vmatprep.subr.mxu0 0.0
    %1215 = vmatpush1.msra.mxu0 %v1064
    %1216 = vmatprep.subr.mxu0 0.0
    %1217 = vmatpush1.msra.mxu0 %v1061
    %1218 = vmatprep.subr.mxu0 0.0
    %1219 = vmatpush1.msra.mxu0 %v1058
    %1220 = vmatprep.subr.mxu0 0.0
    %1221 = vmatpush1.msra.mxu0 %v1055
    %1222 = vmatprep.subr.mxu0 0.0
    %1223 = vmatpush2.msra.mxu0 0.0
    %1224 = vmatprep.subr.mxu0 0.0
    %1225 = vmatpush2.msra.mxu0 0.0
    %1226 = vmatprep.subr.mxu0 0.0
    %1227 = vmatpush2.msra.mxu0 0.0
    %1228 = vmatprep.subr.mxu0 0.0
    %1229 = vmatpush2.msra.mxu0 0.0
    %1230 = vmatprep.subr.mxu0 0.0
    %1231 = vmatpush2.msra.mxu0 0.0
    %1232 = vmatprep.subr.mxu0 0.0
    %1233 = vmatpush2.msra.mxu0 0.0
    %1234 = vmatprep.subr.mxu0 0.0
    %1235 = vmatpush2.msra.mxu0 0.0
    %1236 = vmatprep.subr.mxu0 0.0
    %1237 = vmatpush2.msra.mxu0 0.0
    %1238 = vmatprep.subr.mxu0 0.0
    %1239 = vmatpush2.msra.mxu0 0.0
    %1240 = vmatprep.subr.mxu0 0.0
    %1241 = vmatpush2.msra.mxu0 0.0
    %1242 = vmatprep.subr.mxu0 0.0
    %1243 = vmatpush2.msra.mxu0 0.0
    %1244 = vmatprep.subr.mxu0 0.0
    %1245 = vmatpush2.msra.mxu0 0.0
    %1246 = vmatprep.subr.mxu0 0.0
    %1247 = vmatpush2.msra.mxu0 0.0
    %1248 = vmatprep.subr.mxu0 0.0
    %1249 = vmatpush2.msra.mxu0 0.0
    %1250 = vmatprep.subr.mxu0 0.0
    %1251 = vmatpush2.msra.mxu0 0.0
    %1252 = vmatprep.subr.mxu0 0.0
    %1253 = vmatpush2.msra.mxu0 0.0
    %1254 = vmatprep.mubr.f32.mxu0 0.0
    %1255 = vmatmul.mubr.f32.gmra.mxu0 %v843
    %v1256 = vpop.f32.mrf.mxu0
    %v1257 = vadd.f32 %v1115, %v1256
    %v1258 = vpop.f32.mrf.mxu0
    %1259 = vdwg.mxu0
    %v1260 = vadd.f32 %v978, %v1186
    %v1261 = vadd.f32 %v980, %v1188
    %v1262 = vmul.f32 %v1260, 0.5
    %v1263 = vmul.f32 %v1261, 0.5
    %v1264 = vtanh.pop %v1262
    %v1265 = vtanh.pop %v1263
    %v1266 = vmul.f32 %v1264, 0.5
    %v1267 = vmul.f32 %v1265, 0.5
    %v1268 = vadd.f32 %v1266, 0.5
    %v1269 = vadd.f32 %v1267, 0.5
    %v1270 = vmul.f32 %v1268, %v1257
    %v1271 = vadd.f32 %v1049, %v1270
    %v1272 = vtanh.pop %v1271
    %v1273 = vsub.f32 1.0, %v1269
    %v1274 = vmul.f32 %v1273, %v1272
    %v1275 = vmul.f32 %v1269, %v843
    %v1276 = vadd.f32 %v1274, %v1275
    %s1277 = scalar_lea.vmem %s22, 8
    %1278 = vst [vmem:[%s1277] sm:$0xff] %v1276
    %v1279 = vld [vmem:[%s17] sm:$0x1]
    %v1280 = vld [vmem:[%s18] sm:$0x1]
    %1281 = vadd.xlane.f32.xlu0 %v1276
    %v1282 = vpop.xlane.xlu0 %1281
    %v1283 = vmul.f32 %v1282, 0.03125
    %v1284 = vsub.f32 %v1276, %v1283
    %v1285 = vsel %vm258, %v1284, 0.0
    %v1286 = vmul.f32 %v1285, %v1285
    %1287 = vadd.xlane.f32.xlu0 %v1286
    %v1288 = vpop.xlane.xlu0 %1287
    %v1289 = vmul.f32 %v1288, 0.03125
    %v1290 = vadd.f32 %v1289, 1e-05
    %v1291 = vrsqrt.pop %v1290
    %v1292 = vmul.f32 %v1285, %v1291
    %v1294 = vlaneseq
    %v1295 = vshrl.u32 %v1294, 7
    %v1296 = vsub.s32 0, %v1295
    %v1297 = vrot.slane %v1279, %v1296
    %v1299 = vmul.f32 %v1292, %v1297
    %v1301 = vlaneseq
    %v1302 = vshrl.u32 %v1301, 7
    %v1303 = vsub.s32 0, %v1302
    %v1304 = vrot.slane %v1280, %v1303
    %v1306 = vadd.f32 %v1299, %v1304
    %v1307 = vld [vmem:[%s19] sm:$0x1]
    %v1309 = vlaneseq
    %v1310 = vshrl.u32 %v1309, 7
    %v1311 = vsub.s32 0, %v1310
    %v1312 = vrot.slane %v1307, %v1311
    %v1314 = vmul.f32 %v1306, %v1312
    %1315 = vadd.xlane.f32.xlu0 %v1314
    %v1316 = vpop.xlane.xlu0 %1315
    %s1317 = sld [smem:[#allocation2]]
    %v1318 = vstv %s1317
    %v1319 = vadd.f32 %v1316, %v1318
    %vm1320 = vcmask 7168
    %1321 = vst.msk [vmem:[%s21] sm:$0xff] %vm1320, %v1319
    // Predicated region
    $region102: #{r_critic_forward.1} parent=1 // pred_check
      _
    $region103: #{r_critic_forward.1} parent=1 // pred_check_branch
      %1323 = sbr.rel (0) target = $region105
    $region104: #{r_critic_forward.1} parent=1 // pred_region
      _
    $region105: #{r_critic_forward.1} parent=1 // pred_fallthru
      _
    // Predicated region
    $region106: #{r_critic_forward.1} parent=1 // pred_check
      _
    $region107: #{r_critic_forward.1} parent=1 // pred_check_branch
      %1325 = sbr.rel (0) target = $region109
    $region108: #{r_critic_forward.1} parent=1 // pred_region
      _
    $region109: #{r_critic_forward.1} parent=1 // pred_fallthru
      _
    // Predicated region
    $region110: #{r_critic_forward.1} parent=1 // pred_check
      _
    $region111: #{r_critic_forward.1} parent=1 // pred_check_branch
      %1327 = sbr.rel (0) target = $region113
    $region112: #{r_critic_forward.1} parent=1 // pred_region
      _
    $region113: #{r_critic_forward.1} parent=1 // pred_fallthru
      _
    // Predicated region
    $region114: #{r_critic_forward.1} parent=1 // pred_check
      _
    $region115: #{r_critic_forward.1} parent=1 // pred_check_branch
      %1329 = sbr.rel (0) target = $region117
    $region116: #{r_critic_forward.1} parent=1 // pred_region
      _
    $region117: #{r_critic_forward.1} parent=1 // pred_fallthru
      _
    %1330 = vsyncpa [#allocation4], 1
    %1331 = vsyncpa [#allocation6], 1
    %1332 = vsyncpa [#allocation9], 1

</llo_original>
